<compile_context>
chip_gen: v6e
topology: v6e:2x2x1
jax: 0.10.0
libtpu: 0.0.40
codegen_flags: <defaults>
</compile_context>

<pallas_src>
import functools

import jax
import jax.numpy as jnp
from jax.experimental import pallas as pl
from jax.experimental.pallas import tpu as pltpu


def highway_kernel(x_ref, wt_ref, wh_ref, bt_ref, bh_ref, o_ref,
                   *, tn, feat_axis, precision):
    j = pl.program_id(feat_axis)  # output-feature tile index

    x = x_ref[...]  # (bm, F) in the matmul input dtype (bf16 preferred on v6e/v7x)

    # Two MXU passes with f32 accumulation: gate and transform linears for
    # this feature tile.  (Padded rows of a partial final batch block flow
    # through sigmoid on undefined contents; they are never written back.)
    zt = jnp.dot(x, wt_ref[...], preferred_element_type=jnp.float32,
                 precision=precision)
    zh = jnp.dot(x, wh_ref[...], preferred_element_type=jnp.float32,
                 precision=precision)

    t = jax.nn.sigmoid(zt + bt_ref[...].astype(jnp.float32))   # gate T
    h = zh + bh_ref[...].astype(jnp.float32)                   # transform H

    # x restricted to this feature tile; x is resident in VMEM so the slice is
    # free (lane-aligned: start is a multiple of tn >= 128).
    start = pl.multiple_of(j * tn, tn)
    x_tile = x_ref[:, pl.ds(start, tn)].astype(jnp.float32)

    # y = x*(1-t) + h*t  ==  x + t*(h - x)
    o_ref[...] = (x_tile + t * (h - x_tile)).astype(o_ref.dtype)


def _pick_block_n(n_features):
    """Output-feature tile width: full F when small, else a 128-multiple
    divisor <= 512 (lane-dense output stores, bounded weight-block VMEM)."""
    if n_features <= 512:
        return n_features
    for cand in range(512, 127, -128):
        if n_features % cand == 0:
            return cand
    # TODO(synk): F > 512 and not a multiple of 128: whole-F block (VMEM-heavy,
    # lane-masked stores).  Pad F to a multiple of 128 upstream for best perf.
    return n_features


def _sublane_pack(dtype):
    """Rows per packed sublane group: 8 for f32, 16 for bf16, 32 for 1-byte."""
    return max(8, 32 // jnp.dtype(dtype).itemsize)


def _pick_block_m(batch, block_m, dtype):
    """Batch tile height: single grid step for small batches (no pointless
    splitting on single-TC chips), dtype-packed rounding for partial tiles."""
    if batch <= block_m:
        return batch
    pack = _sublane_pack(dtype)
    return max(pack, (block_m // pack) * pack)


def _vmem_est(bm, tn, F, in_bytes, w_bytes):
    """Resident VMEM bytes for one grid step (double-buffered pipeline)."""
    return (2 * bm * F * in_bytes            # x tiles
            + 2 * 2 * F * tn * w_bytes       # wt + wh blocks
            + 2 * bm * tn * in_bytes         # out tiles
            + 2 * bm * tn * 4                # f32 zt/zh intermediates
            + 4 * 2 * tn * w_bytes)          # bias blocks


@functools.partial(jax.jit, static_argnames=("block_m", "block_n"))
def highway_layer(x, wt, bt, wh, bh, *, block_m=1024, block_n=None):
    """Highway layer forward.

    x:       (B, F)
    wt, wh:  (F, F)  stored (in_features, out_features)
    bt, bh:  (1, F)
    """
    B, F = x.shape
    tn = _pick_block_n(F) if block_n is None else block_n
    assert F % tn == 0, "block_n must divide n_features"
    bm = _pick_block_m(B, block_m, x.dtype)

    in_bytes = jnp.dtype(x.dtype).itemsize
    w_bytes = jnp.dtype(wt.dtype).itemsize
    pack = _sublane_pack(x.dtype)

    # Shrink bm (then tn) until the estimate fits a v7x-safe budget.
    cap = 48 * 2**20
    while _vmem_est(bm, tn, F, in_bytes, w_bytes) > cap:
        if bm > max(pack, 128):
            bm = max(pack, (bm // 2 // pack) * pack)
        elif tn >= 256:          # halving keeps tn a 128-multiple divisor of F
            tn //= 2
        else:
            break

    n_i = pl.cdiv(B, bm)
    n_j = F // tn

    # Resident operand by reuse: keep x resident across feature tiles when the
    # re-streamed weight bytes are the cheaper direction (bm >= 2*tn), else
    # swap the grid so the weight blocks stay resident and x streams.
    x_resident = (bm >= 2 * tn) or (n_i == 1)
    if x_resident:
        grid = (n_i, n_j)
        feat_axis = 1
        x_map = lambda i, j: (i, 0)
        w_map = lambda i, j: (0, j)
        b_map = lambda i, j: (0, j)
        o_map = lambda i, j: (i, j)
    else:
        grid = (n_j, n_i)
        feat_axis = 0
        x_map = lambda j, i: (i, 0)
        w_map = lambda j, i: (0, j)
        b_map = lambda j, i: (0, j)
        o_map = lambda j, i: (i, j)

    # Strict f32 parity with the PyTorch module; bf16 runs the fast MXU path.
    precision = (jax.lax.Precision.HIGHEST if x.dtype == jnp.float32
                 else jax.lax.Precision.DEFAULT)

    est = _vmem_est(bm, tn, F, in_bytes, w_bytes)
    vmem_limit = int(min(48 * 2**20, max(est + est // 2 + (2 << 20), 32 * 2**20)))

    kernel = functools.partial(highway_kernel, tn=tn, feat_axis=feat_axis,
                               precision=precision)

    return pl.pallas_call(
        kernel,
        out_shape=jax.ShapeDtypeStruct((B, F), x.dtype),
        grid_spec=pltpu.PrefetchScalarGridSpec(
            num_scalar_prefetch=0,
            grid=grid,
            in_specs=[
                pl.BlockSpec((bm, F), x_map),      # x tile (whole feature dim)
                pl.BlockSpec((F, tn), w_map),      # Wt feature-tile block
                pl.BlockSpec((F, tn), w_map),      # Wh feature-tile block
                pl.BlockSpec((1, tn), b_map),      # bt block
                pl.BlockSpec((1, tn), b_map),      # bh block
            ],
            out_specs=pl.BlockSpec((bm, tn), o_map),
        ),
        compiler_params=pltpu.CompilerParams(
            dimension_semantics=("parallel", "parallel"),
            vmem_limit_bytes=vmem_limit,
        ),
    )(x, wt, wh, bt, bh)


def init_linear_params(key, in_features, out_features):
    """Deterministic init matching torch.nn.Linear default (uniform +-1/sqrt(in)).

    Returns weight in (in_features, out_features) layout (transposed vs torch).
    """
    kw, kb = jax.random.split(key)
    bound = 1.0 / jnp.sqrt(jnp.float32(in_features))
    w = jax.random.uniform(kw, (in_features, out_features), jnp.float32,
                           minval=-bound, maxval=bound)
    b = jax.random.uniform(kb, (1, out_features), jnp.float32,
                           minval=-bound, maxval=bound)
    return w, b


if __name__ == "__main__":
    n_features = 128   # module default
    batch = 16

    key = jax.random.PRNGKey(0)
    kx, kt, kh = jax.random.split(key, 3)

    x = jax.random.normal(kx, (batch, n_features), jnp.float32)
    wt, bt = init_linear_params(kt, n_features, n_features)
    wh, bh = init_linear_params(kh, n_features, n_features)

    def reference(x, wt, bt, wh, bh):
        t = jax.nn.sigmoid(x @ wt + bt)
        h = x @ wh + bh
        return x * (1.0 - t) + h * t

    # 1) f32 path, default tiles (single grid step for this tiny shape).
    y32 = jax.block_until_ready(highway_layer(x, wt, bt, wh, bh))
    ref32 = reference(x, wt, bt, wh, bh)
    assert jnp.allclose(y32, ref32, atol=1e-4, rtol=1e-4), "f32 mismatch vs reference"

    # 2) f32 path exercising the weight-resident (swapped-grid) ordering:
    #    bm=8 < 2*tn=256 and two batch tiles.
    y32b = jax.block_until_ready(
        highway_layer(x, wt, bt, wh, bh, block_m=8, block_n=128))
    assert jnp.allclose(y32b, ref32, atol=1e-4, rtol=1e-4), \
        "f32 (weight-resident grid) mismatch vs reference"

    # 3) bf16 matmul-input path (recommended on v6e/v7x): f32 accumulation and
    #    f32 epilogue inside, so only bf16 input/output rounding differs.
    xb, wtb, btb, whb, bhb = (a.astype(jnp.bfloat16) for a in (x, wt, bt, wh, bh))
    yb = jax.block_until_ready(highway_layer(xb, wtb, btb, whb, bhb))
    refb = reference(*(a.astype(jnp.float32) for a in (xb, wtb, btb, whb, bhb)))
    assert jnp.allclose(yb.astype(jnp.float32), refb, atol=2e-2, rtol=2e-2), \
        "bf16 mismatch vs reference"

    print("KERNEL_OK")
</pallas_src>

<mosaic_0001>
module attributes {stable_mosaic.version = 11 : i64} {
  func.func @highway_kernel(%arg0: i32, %arg1: i32, %arg2: memref<16x128xf32, #tpu.memory_space<vmem>>, %arg3: memref<128x128xf32, #tpu.memory_space<vmem>>, %arg4: memref<128x128xf32, #tpu.memory_space<vmem>>, %arg5: memref<1x128xf32, #tpu.memory_space<vmem>>, %arg6: memref<1x128xf32, #tpu.memory_space<vmem>>, %arg7: memref<16x128xf32, #tpu.memory_space<vmem>>) attributes {dimension_semantics = [#tpu.dimension_semantics<parallel>, #tpu.dimension_semantics<parallel>], iteration_bounds = array<i64: 1, 1>, scalar_prefetch = 0 : i64, scratch_operands = 0 : i64, tpu.core_type = #tpu.core_type<tc>, window_params = [{transform_indices = @transform_0, window_bounds = array<i64: 16, 128>}, {transform_indices = @transform_1, window_bounds = array<i64: 128, 128>}, {transform_indices = @transform_2, window_bounds = array<i64: 128, 128>}, {transform_indices = @transform_3, window_bounds = array<i64: 1, 128>}, {transform_indices = @transform_4, window_bounds = array<i64: 1, 128>}, {transform_indices = @transform_5, window_bounds = array<i64: 16, 128>}]} {
    %c0 = arith.constant 0 : index
    %c0_0 = arith.constant 0 : index
    %0 = vector.load %arg2[%c0, %c0_0] : memref<16x128xf32, #tpu.memory_space<vmem>>, vector<16x128xf32>
    %c0_1 = arith.constant 0 : index
    %c0_2 = arith.constant 0 : index
    %1 = vector.load %arg3[%c0_1, %c0_2] : memref<128x128xf32, #tpu.memory_space<vmem>>, vector<128x128xf32>
    %cst = arith.constant dense<0.000000e+00> : vector<16x128xf32>
    %2 = tpu.matmul %0, %1, %cst {dimension_numbers = #tpu.dot_dimension_numbers<[1], [0], [0], [1], [0, 0, 1, 1], [], []>, precision = #tpu.contract_precision<fp32>} : vector<16x128xf32>, vector<128x128xf32>, vector<16x128xf32> -> vector<16x128xf32>
    %c0_3 = arith.constant 0 : index
    %c0_4 = arith.constant 0 : index
    %3 = vector.load %arg4[%c0_3, %c0_4] : memref<128x128xf32, #tpu.memory_space<vmem>>, vector<128x128xf32>
    %cst_5 = arith.constant dense<0.000000e+00> : vector<16x128xf32>
    %4 = tpu.matmul %0, %3, %cst_5 {dimension_numbers = #tpu.dot_dimension_numbers<[1], [0], [0], [1], [0, 0, 1, 1], [], []>, precision = #tpu.contract_precision<fp32>} : vector<16x128xf32>, vector<128x128xf32>, vector<16x128xf32> -> vector<16x128xf32>
    %c0_6 = arith.constant 0 : index
    %c0_7 = arith.constant 0 : index
    %5 = vector.load %arg5[%c0_6, %c0_7] : memref<1x128xf32, #tpu.memory_space<vmem>>, vector<1x128xf32>
    %6 = vector.broadcast %5 : vector<1x128xf32> to vector<16x128xf32>
    %7 = arith.addf %2, %6 : vector<16x128xf32>
    %8 = arith.negf %7 : vector<16x128xf32>
    %9 = math.exp %8 : vector<16x128xf32>
    %cst_8 = arith.constant 1.000000e+00 : f32
    %10 = vector.broadcast %cst_8 : f32 to vector<16x128xf32>
    %11 = arith.addf %10, %9 : vector<16x128xf32>
    %12 = arith.divf %10, %11 : vector<16x128xf32>
    %c0_9 = arith.constant 0 : index
    %c0_10 = arith.constant 0 : index
    %13 = vector.load %arg6[%c0_9, %c0_10] : memref<1x128xf32, #tpu.memory_space<vmem>>, vector<1x128xf32>
    %14 = vector.broadcast %13 : vector<1x128xf32> to vector<16x128xf32>
    %15 = arith.addf %4, %14 : vector<16x128xf32>
    %c128_i32 = arith.constant 128 : i32
    %16 = arith.muli %arg1, %c128_i32 : i32
    %17 = tpu.assume_multiple %16, 128 : i32
    %c0_11 = arith.constant 0 : index
    %18 = arith.index_cast %17 : i32 to index
    %19 = vector.load %arg2[%c0_11, %18] : memref<16x128xf32, #tpu.memory_space<vmem>>, vector<16x128xf32>
    %20 = arith.subf %15, %19 : vector<16x128xf32>
    %21 = arith.mulf %12, %20 : vector<16x128xf32>
    %22 = arith.addf %19, %21 : vector<16x128xf32>
    %c0_12 = arith.constant 0 : index
    %c0_13 = arith.constant 0 : index
    %23 = vector.load %arg7[%c0_12, %c0_13] : memref<16x128xf32, #tpu.memory_space<vmem>>, vector<16x128xf32>
    tpu.vector_store %arg7[%c0_12, %c0_13], %22 {strides = array<i32>} : memref<16x128xf32, #tpu.memory_space<vmem>>, vector<16x128xf32>,
    return
  }
  func.func @transform_0(%arg0: i32, %arg1: i32) -> (i32, i32) {
    %c0_i32 = arith.constant 0 : i32
    %c0_i32_0 = arith.constant 0 : i32
    return %arg0, %c0_i32 : i32, i32
  }
  func.func @transform_1(%arg0: i32, %arg1: i32) -> (i32, i32) {
    %c0_i32 = arith.constant 0 : i32
    %c0_i32_0 = arith.constant 0 : i32
    return %c0_i32, %arg1 : i32, i32
  }
  func.func @transform_2(%arg0: i32, %arg1: i32) -> (i32, i32) {
    %c0_i32 = arith.constant 0 : i32
    %c0_i32_0 = arith.constant 0 : i32
    return %c0_i32, %arg1 : i32, i32
  }
  func.func @transform_3(%arg0: i32, %arg1: i32) -> (i32, i32) {
    %c0_i32 = arith.constant 0 : i32
    %c0_i32_0 = arith.constant 0 : i32
    return %c0_i32, %arg1 : i32, i32
  }
  func.func @transform_4(%arg0: i32, %arg1: i32) -> (i32, i32) {
    %c0_i32 = arith.constant 0 : i32
    %c0_i32_0 = arith.constant 0 : i32
    return %c0_i32, %arg1 : i32, i32
  }
  func.func @transform_5(%arg0: i32, %arg1: i32) -> (i32, i32) {
    %c0_i32 = arith.constant 0 : i32
    return %arg0, %arg1 : i32, i32
  }
}

</mosaic_0001>

<llo_original>
// kernel: highway_layer.1
$region0: #{highway_layer.1}
  #allocation0 [shape = 'u32[]', space=smem, size = 0x4, offset = 0x4, fixed_abs, tag = 'smem constant byte address 0x4 - core index']
  #allocation1 [shape = 'u32[144,128]{1,0:T(1,128)}', space=vmem, size = 0x12000, scoped, tag = 'internal scratch']
  %s0 = inlined_call_operand.hbm [shape: f32[16,128], index: 0, kind: input, shape index: {}]
  %s1 = inlined_call_operand.hbm [shape: f32[128,128], index: 1, kind: input, shape index: {}]
  %s2 = inlined_call_operand.hbm [shape: f32[128,128], index: 2, kind: input, shape index: {}]
  %s3 = inlined_call_operand.vmem [shape: f32[1,128], index: 3, kind: input, shape index: {}]
  %s4 = inlined_call_operand.vmem [shape: f32[1,128], index: 4, kind: input, shape index: {}]
  %s5 = inlined_call_operand.hbm [shape: f32[16,128], index: 5, kind: output, shape index: {}]
  %s6 = sld [smem:[#allocation0]]
  $region42: #{highway_layer.1} parent=0
    _
  %s8 = ssub.s32 1, %s6
  %s9 = scalar_select 0, %s8, %s6
  $region1: #{highway_layer.1} parent=0
    #allocation2 [shape = 'u8[8192]{0}', space=vmem, size = 0x2000, scoped, tag = 'input window, operand 0, single buffered']
    #allocation3 [shape = 's32[1]{0}', space=sflag, size = 0x4, scoped, tag = 'scoped memory for highway_layer.1']
    #allocation4 [shape = 's32[1]{0}', space=sflag, size = 0x4, scoped, tag = 'scoped memory for highway_layer.1']
    #allocation5 [shape = 'u8[65536]{0}', space=vmem, size = 0x10000, scoped, tag = 'input window, operand 1, single buffered']
    #allocation6 [shape = 's32[1]{0}', space=sflag, size = 0x4, scoped, tag = 'scoped memory for highway_layer.1']
    #allocation7 [shape = 'u8[65536]{0}', space=vmem, size = 0x10000, scoped, tag = 'input window, operand 2, single buffered']
    #allocation8 [shape = 'u8[8192]{0}', space=vmem, size = 0x2000, scoped, tag = 'output window, operand 0, single buffered']
    %10 = vsyncpa [#allocation3], 0
    %11 = vsyncpa [#allocation6], 0
    %12 = vsyncpa [#allocation4], 0
    // Predicated region
    $region2: #{highway_layer.1} parent=1 // pred_check
      _
    $region3: #{highway_layer.1} parent=1 // pred_check_branch
      %14 = sbr.rel (0) target = $region5
    $region4: #{highway_layer.1} parent=1 // pred_region
      %s16 = ssub.s32 256, 256
      %17 = vsyncadd [#allocation3], %s16
      %s18 = sshll.u32 [#allocation2], 4
      %s19 = int_to_ptr.vmem [resolvable:$true] %s18
      %24 = dma.hbm_to_vmem [thread:$0]  %s0, 256, %s19, [#allocation3], 128, 128, 8
    $region5: #{highway_layer.1} parent=1 // pred_fallthru
      _
    // Predicated region
    $region6: #{highway_layer.1} parent=1 // pred_check
      _
    $region7: #{highway_layer.1} parent=1 // pred_check_branch
      %26 = sbr.rel (0) target = $region9
    $region8: #{highway_layer.1} parent=1 // pred_region
      %s28 = ssub.s32 2048, 2048
      %29 = vsyncadd [#allocation6], %s28
      %s30 = sshll.u32 [#allocation5], 4
      %s31 = int_to_ptr.vmem [resolvable:$true] %s30
      %36 = dma.hbm_to_vmem [thread:$0]  %s1, 2048, %s31, [#allocation6], 128, 128, 8
    $region9: #{highway_layer.1} parent=1 // pred_fallthru
      _
    // Predicated region
    $region10: #{highway_layer.1} parent=1 // pred_check
      _
    $region11: #{highway_layer.1} parent=1 // pred_check_branch
      %38 = sbr.rel (0) target = $region13
    $region12: #{highway_layer.1} parent=1 // pred_region
      %s40 = ssub.s32 2048, 2048
      %41 = vsyncadd [#allocation6], %s40
      %s42 = sshll.u32 [#allocation7], 4
      %s43 = int_to_ptr.vmem [resolvable:$true] %s42
      %48 = dma.hbm_to_vmem [thread:$0]  %s2, 2048, %s43, [#allocation6], 128, 128, 8
    $region13: #{highway_layer.1} parent=1 // pred_fallthru
      _
    // Predicated region
    $region14: #{highway_layer.1} parent=1 // pred_check
      _
    $region15: #{highway_layer.1} parent=1 // pred_check_branch
      %50 = sbr.rel (0) target = $region17
    $region16: #{highway_layer.1} parent=1 // pred_region
      _
    $region17: #{highway_layer.1} parent=1 // pred_fallthru
      _
    // Predicated region
    $region18: #{highway_layer.1} parent=1 // pred_check
      _
    $region19: #{highway_layer.1} parent=1 // pred_check_branch
      %52 = sbr.rel (0) target = $region21
    $region20: #{highway_layer.1} parent=1 // pred_region
      _
    $region21: #{highway_layer.1} parent=1 // pred_fallthru
      _
    // Predicated region
    $region22: #{highway_layer.1} parent=1 // pred_check
      _
    $region23: #{highway_layer.1} parent=1 // pred_check_branch
      %54 = sbr.rel (0) target = $region25
    $region24: #{highway_layer.1} parent=1 // pred_region
      %55 = dma.done [#allocation3], 256
    $region25: #{highway_layer.1} parent=1 // pred_fallthru
      _
    // Predicated region
    $region26: #{highway_layer.1} parent=1 // pred_check
      _
    $region27: #{highway_layer.1} parent=1 // pred_check_branch
      %57 = sbr.rel (0) target = $region29
    $region28: #{highway_layer.1} parent=1 // pred_region
      %58 = dma.done [#allocation6], 2048
    $region29: #{highway_layer.1} parent=1 // pred_fallthru
      _
    // Predicated region
    $region30: #{highway_layer.1} parent=1 // pred_check
      _
    $region31: #{highway_layer.1} parent=1 // pred_check_branch
      %60 = sbr.rel (0) target = $region33
    $region32: #{highway_layer.1} parent=1 // pred_region
      %61 = dma.done [#allocation6], 2048
    $region33: #{highway_layer.1} parent=1 // pred_fallthru
      _
    %v62 = vld [vmem:[#allocation2] sm:$0xff]
    %v63 = vld [vmem:[#allocation2 + $0x8] sm:$0xff]
    %v64 = vld [vmem:[#allocation5] sm:$0xff]
    %v65 = vld [vmem:[#allocation5 + $0x8] sm:$0xff]
    %v66 = vld [vmem:[#allocation5 + $0x10] sm:$0xff]
    %v67 = vld [vmem:[#allocation5 + $0x18] sm:$0xff]
    %v68 = vld [vmem:[#allocation5 + $0x20] sm:$0xff]
    %v69 = vld [vmem:[#allocation5 + $0x28] sm:$0xff]
    %v70 = vld [vmem:[#allocation5 + $0x30] sm:$0xff]
    %v71 = vld [vmem:[#allocation5 + $0x38] sm:$0xff]
    %v72 = vld [vmem:[#allocation5 + $0x40] sm:$0xff]
    %v73 = vld [vmem:[#allocation5 + $0x48] sm:$0xff]
    %v74 = vld [vmem:[#allocation5 + $0x50] sm:$0xff]
    %v75 = vld [vmem:[#allocation5 + $0x58] sm:$0xff]
    %v76 = vld [vmem:[#allocation5 + $0x60] sm:$0xff]
    %v77 = vld [vmem:[#allocation5 + $0x68] sm:$0xff]
    %v78 = vld [vmem:[#allocation5 + $0x70] sm:$0xff]
    %v79 = vld [vmem:[#allocation5 + $0x78] sm:$0xff]
    %v80 = vld [vmem:[#allocation7] sm:$0xff]
    %v81 = vld [vmem:[#allocation7 + $0x8] sm:$0xff]
    %v82 = vld [vmem:[#allocation7 + $0x10] sm:$0xff]
    %v83 = vld [vmem:[#allocation7 + $0x18] sm:$0xff]
    %v84 = vld [vmem:[#allocation7 + $0x20] sm:$0xff]
    %v85 = vld [vmem:[#allocation7 + $0x28] sm:$0xff]
    %v86 = vld [vmem:[#allocation7 + $0x30] sm:$0xff]
    %v87 = vld [vmem:[#allocation7 + $0x38] sm:$0xff]
    %v88 = vld [vmem:[#allocation7 + $0x40] sm:$0xff]
    %v89 = vld [vmem:[#allocation7 + $0x48] sm:$0xff]
    %v90 = vld [vmem:[#allocation7 + $0x50] sm:$0xff]
    %v91 = vld [vmem:[#allocation7 + $0x58] sm:$0xff]
    %v92 = vld [vmem:[#allocation7 + $0x60] sm:$0xff]
    %v93 = vld [vmem:[#allocation7 + $0x68] sm:$0xff]
    %v94 = vld [vmem:[#allocation7 + $0x70] sm:$0xff]
    %v95 = vld [vmem:[#allocation7 + $0x78] sm:$0xff]
    %v96 = vld [vmem:[%s3] sm:$0x1]
    %v98 = vlaneseq
    %v99 = vshrl.u32 %v98, 7
    %v100 = vsub.s32 0, %v99
    %v101 = vrot.slane %v96, %v100
    %103 = vmatprep.subr.mxu0 0.0
    %v104 = vand.u32 %v79, 4294901760
    %105 = vmatpush1.msra.mxu0 %v104
    %106 = vmatprep.subr.mxu0 0.0
    %v107 = vand.u32 %v78, 4294901760
    %108 = vmatpush1.msra.mxu0 %v107
    %109 = vmatprep.subr.mxu0 0.0
    %v110 = vand.u32 %v77, 4294901760
    %111 = vmatpush1.msra.mxu0 %v110
    %112 = vmatprep.subr.mxu0 0.0
    %v113 = vand.u32 %v76, 4294901760
    %114 = vmatpush1.msra.mxu0 %v113
    %115 = vmatprep.subr.mxu0 0.0
    %v116 = vand.u32 %v75, 4294901760
    %117 = vmatpush1.msra.mxu0 %v116
    %118 = vmatprep.subr.mxu0 0.0
    %v119 = vand.u32 %v74, 4294901760
    %120 = vmatpush1.msra.mxu0 %v119
    %121 = vmatprep.subr.mxu0 0.0
    %v122 = vand.u32 %v73, 4294901760
    %123 = vmatpush1.msra.mxu0 %v122
    %124 = vmatprep.subr.mxu0 0.0
    %v125 = vand.u32 %v72, 4294901760
    %126 = vmatpush1.msra.mxu0 %v125
    %127 = vmatprep.subr.mxu0 0.0
    %v128 = vand.u32 %v71, 4294901760
    %129 = vmatpush1.msra.mxu0 %v128
    %130 = vmatprep.subr.mxu0 0.0
    %v131 = vand.u32 %v70, 4294901760
    %132 = vmatpush1.msra.mxu0 %v131
    %133 = vmatprep.subr.mxu0 0.0
    %v134 = vand.u32 %v69, 4294901760
    %135 = vmatpush1.msra.mxu0 %v134
    %136 = vmatprep.subr.mxu0 0.0
    %v137 = vand.u32 %v68, 4294901760
    %138 = vmatpush1.msra.mxu0 %v137
    %139 = vmatprep.subr.mxu0 0.0
    %v140 = vand.u32 %v67, 4294901760
    %141 = vmatpush1.msra.mxu0 %v140
    %142 = vmatprep.subr.mxu0 0.0
    %v143 = vand.u32 %v66, 4294901760
    %144 = vmatpush1.msra.mxu0 %v143
    %145 = vmatprep.subr.mxu0 0.0
    %v146 = vand.u32 %v65, 4294901760
    %147 = vmatpush1.msra.mxu0 %v146
    %148 = vmatprep.subr.mxu0 0.0
    %v149 = vand.u32 %v64, 4294901760
    %150 = vmatpush1.msra.mxu0 %v149
    %151 = vmatprep.subr.mxu0 0.0
    %152 = vmatpush2.msra.mxu0 0.0
    %153 = vmatprep.subr.mxu0 0.0
    %154 = vmatpush2.msra.mxu0 0.0
    %155 = vmatprep.subr.mxu0 0.0
    %156 = vmatpush2.msra.mxu0 0.0
    %157 = vmatprep.subr.mxu0 0.0
    %158 = vmatpush2.msra.mxu0 0.0
    %159 = vmatprep.subr.mxu0 0.0
    %160 = vmatpush2.msra.mxu0 0.0
    %161 = vmatprep.subr.mxu0 0.0
    %162 = vmatpush2.msra.mxu0 0.0
    %163 = vmatprep.subr.mxu0 0.0
    %164 = vmatpush2.msra.mxu0 0.0
    %165 = vmatprep.subr.mxu0 0.0
    %166 = vmatpush2.msra.mxu0 0.0
    %167 = vmatprep.subr.mxu0 0.0
    %168 = vmatpush2.msra.mxu0 0.0
    %169 = vmatprep.subr.mxu0 0.0
    %170 = vmatpush2.msra.mxu0 0.0
    %171 = vmatprep.subr.mxu0 0.0
    %172 = vmatpush2.msra.mxu0 0.0
    %173 = vmatprep.subr.mxu0 0.0
    %174 = vmatpush2.msra.mxu0 0.0
    %175 = vmatprep.subr.mxu0 0.0
    %176 = vmatpush2.msra.mxu0 0.0
    %177 = vmatprep.subr.mxu0 0.0
    %178 = vmatpush2.msra.mxu0 0.0
    %179 = vmatprep.subr.mxu0 0.0
    %180 = vmatpush2.msra.mxu0 0.0
    %181 = vmatprep.subr.mxu0 0.0
    %182 = vmatpush2.msra.mxu0 0.0
    %183 = vmatprep.mubr.f32.mxu0 0.0
    %v184 = vand.u32 %v62, 4294901760
    %v185 = vsub.f32 %v62, %v184
    %v186 = vand.u32 %v185, 4294901760
    %v187 = vsub.f32 %v185, %v186
    %v188 = vand.u32 %v187, 4294901760
    %189 = vmatmul.mubr.f32.gmra.mxu0 %v188
    %v190 = vpop.f32.mrf.mxu0
    %v191 = vadd.f32 %v101, %v190
    %v192 = vpop.f32.mrf.mxu0
    %193 = vmatprep.mubr.f32.mxu0 0.0
    %v194 = vand.u32 %v63, 4294901760
    %v195 = vsub.f32 %v63, %v194
    %v196 = vand.u32 %v195, 4294901760
    %v197 = vsub.f32 %v195, %v196
    %v198 = vand.u32 %v197, 4294901760
    %199 = vmatmul.mubr.f32.gmra.mxu0 %v198
    %v200 = vpop.f32.mrf.mxu0
    %v201 = vadd.f32 %v101, %v200
    %v202 = vpop.f32.mrf.mxu0
    %203 = vdwg.mxu0
    %204 = vmatprep.subr.mxu0 0.0
    %v205 = vand.u32 %v79, 4294901760
    %v206 = vsub.f32 %v79, %v205
    %v207 = vand.u32 %v206, 4294901760
    %v208 = vsub.f32 %v206, %v207
    %v209 = vand.u32 %v208, 4294901760
    %210 = vmatpush1.msra.mxu0 %v209
    %211 = vmatprep.subr.mxu0 0.0
    %v212 = vand.u32 %v78, 4294901760
    %v213 = vsub.f32 %v78, %v212
    %v214 = vand.u32 %v213, 4294901760
    %v215 = vsub.f32 %v213, %v214
    %v216 = vand.u32 %v215, 4294901760
    %217 = vmatpush1.msra.mxu0 %v216
    %218 = vmatprep.subr.mxu0 0.0
    %v219 = vand.u32 %v77, 4294901760
    %v220 = vsub.f32 %v77, %v219
    %v221 = vand.u32 %v220, 4294901760
    %v222 = vsub.f32 %v220, %v221
    %v223 = vand.u32 %v222, 4294901760
    %224 = vmatpush1.msra.mxu0 %v223
    %225 = vmatprep.subr.mxu0 0.0
    %v226 = vand.u32 %v76, 4294901760
    %v227 = vsub.f32 %v76, %v226
    %v228 = vand.u32 %v227, 4294901760
    %v229 = vsub.f32 %v227, %v228
    %v230 = vand.u32 %v229, 4294901760
    %231 = vmatpush1.msra.mxu0 %v230
    %232 = vmatprep.subr.mxu0 0.0
    %v233 = vand.u32 %v75, 4294901760
    %v234 = vsub.f32 %v75, %v233
    %v235 = vand.u32 %v234, 4294901760
    %v236 = vsub.f32 %v234, %v235
    %v237 = vand.u32 %v236, 4294901760
    %238 = vmatpush1.msra.mxu0 %v237
    %239 = vmatprep.subr.mxu0 0.0
    %v240 = vand.u32 %v74, 4294901760
    %v241 = vsub.f32 %v74, %v240
    %v242 = vand.u32 %v241, 4294901760
    %v243 = vsub.f32 %v241, %v242
    %v244 = vand.u32 %v243, 4294901760
    %245 = vmatpush1.msra.mxu0 %v244
    %246 = vmatprep.subr.mxu0 0.0
    %v247 = vand.u32 %v73, 4294901760
    %v248 = vsub.f32 %v73, %v247
    %v249 = vand.u32 %v248, 4294901760
    %v250 = vsub.f32 %v248, %v249
    %v251 = vand.u32 %v250, 4294901760
    %252 = vmatpush1.msra.mxu0 %v251
    %253 = vmatprep.subr.mxu0 0.0
    %v254 = vand.u32 %v72, 4294901760
    %v255 = vsub.f32 %v72, %v254
    %v256 = vand.u32 %v255, 4294901760
    %v257 = vsub.f32 %v255, %v256
    %v258 = vand.u32 %v257, 4294901760
    %259 = vmatpush1.msra.mxu0 %v258
    %260 = vmatprep.subr.mxu0 0.0
    %v261 = vand.u32 %v71, 4294901760
    %v262 = vsub.f32 %v71, %v261
    %v263 = vand.u32 %v262, 4294901760
    %v264 = vsub.f32 %v262, %v263
    %v265 = vand.u32 %v264, 4294901760
    %266 = vmatpush1.msra.mxu0 %v265
    %267 = vmatprep.subr.mxu0 0.0
    %v268 = vand.u32 %v70, 4294901760
    %v269 = vsub.f32 %v70, %v268
    %v270 = vand.u32 %v269, 4294901760
    %v271 = vsub.f32 %v269, %v270
    %v272 = vand.u32 %v271, 4294901760
    %273 = vmatpush1.msra.mxu0 %v272
    %274 = vmatprep.subr.mxu0 0.0
    %v275 = vand.u32 %v69, 4294901760
    %v276 = vsub.f32 %v69, %v275
    %v277 = vand.u32 %v276, 4294901760
    %v278 = vsub.f32 %v276, %v277
    %v279 = vand.u32 %v278, 4294901760
    %280 = vmatpush1.msra.mxu0 %v279
    %281 = vmatprep.subr.mxu0 0.0
    %v282 = vand.u32 %v68, 4294901760
    %v283 = vsub.f32 %v68, %v282
    %v284 = vand.u32 %v283, 4294901760
    %v285 = vsub.f32 %v283, %v284
    %v286 = vand.u32 %v285, 4294901760
    %287 = vmatpush1.msra.mxu0 %v286
    %288 = vmatprep.subr.mxu0 0.0
    %v289 = vand.u32 %v67, 4294901760
    %v290 = vsub.f32 %v67, %v289
    %v291 = vand.u32 %v290, 4294901760
    %v292 = vsub.f32 %v290, %v291
    %v293 = vand.u32 %v292, 4294901760
    %294 = vmatpush1.msra.mxu0 %v293
    %295 = vmatprep.subr.mxu0 0.0
    %v296 = vand.u32 %v66, 4294901760
    %v297 = vsub.f32 %v66, %v296
    %v298 = vand.u32 %v297, 4294901760
    %v299 = vsub.f32 %v297, %v298
    %v300 = vand.u32 %v299, 4294901760
    %301 = vmatpush1.msra.mxu0 %v300
    %302 = vmatprep.subr.mxu0 0.0
    %v303 = vand.u32 %v65, 4294901760
    %v304 = vsub.f32 %v65, %v303
    %v305 = vand.u32 %v304, 4294901760
    %v306 = vsub.f32 %v304, %v305
    %v307 = vand.u32 %v306, 4294901760
    %308 = vmatpush1.msra.mxu0 %v307
    %309 = vmatprep.subr.mxu0 0.0
    %v310 = vand.u32 %v64, 4294901760
    %v311 = vsub.f32 %v64, %v310
    %v312 = vand.u32 %v311, 4294901760
    %v313 = vsub.f32 %v311, %v312
    %v314 = vand.u32 %v313, 4294901760
    %315 = vmatpush1.msra.mxu0 %v314
    %316 = vmatprep.subr.mxu0 0.0
    %317 = vmatpush2.msra.mxu0 0.0
    %318 = vmatprep.subr.mxu0 0.0
    %319 = vmatpush2.msra.mxu0 0.0
    %320 = vmatprep.subr.mxu0 0.0
    %321 = vmatpush2.msra.mxu0 0.0
    %322 = vmatprep.subr.mxu0 0.0
    %323 = vmatpush2.msra.mxu0 0.0
    %324 = vmatprep.subr.mxu0 0.0
    %325 = vmatpush2.msra.mxu0 0.0
    %326 = vmatprep.subr.mxu0 0.0
    %327 = vmatpush2.msra.mxu0 0.0
    %328 = vmatprep.subr.mxu0 0.0
    %329 = vmatpush2.msra.mxu0 0.0
    %330 = vmatprep.subr.mxu0 0.0
    %331 = vmatpush2.msra.mxu0 0.0
    %332 = vmatprep.subr.mxu0 0.0
    %333 = vmatpush2.msra.mxu0 0.0
    %334 = vmatprep.subr.mxu0 0.0
    %335 = vmatpush2.msra.mxu0 0.0
    %336 = vmatprep.subr.mxu0 0.0
    %337 = vmatpush2.msra.mxu0 0.0
    %338 = vmatprep.subr.mxu0 0.0
    %339 = vmatpush2.msra.mxu0 0.0
    %340 = vmatprep.subr.mxu0 0.0
    %341 = vmatpush2.msra.mxu0 0.0
    %342 = vmatprep.subr.mxu0 0.0
    %343 = vmatpush2.msra.mxu0 0.0
    %344 = vmatprep.subr.mxu0 0.0
    %345 = vmatpush2.msra.mxu0 0.0
    %346 = vmatprep.subr.mxu0 0.0
    %347 = vmatpush2.msra.mxu0 0.0
    %348 = vmatprep.mubr.f32.mxu0 0.0
    %v349 = vand.u32 %v62, 4294901760
    %350 = vmatmul.mubr.f32.gmra.mxu0 %v349
    %v351 = vpop.f32.mrf.mxu0
    %v352 = vadd.f32 %v191, %v351
    %v353 = vpop.f32.mrf.mxu0
    %354 = vmatprep.mubr.f32.mxu0 0.0
    %v355 = vand.u32 %v63, 4294901760
    %356 = vmatmul.mubr.f32.gmra.mxu0 %v355
    %v357 = vpop.f32.mrf.mxu0
    %v358 = vadd.f32 %v201, %v357
    %v359 = vpop.f32.mrf.mxu0
    %360 = vdwg.mxu0
    %361 = vmatprep.subr.mxu0 0.0
    %v362 = vand.u32 %v79, 4294901760
    %v363 = vsub.f32 %v79, %v362
    %364 = vmatpush1.msra.mxu0 %v363
    %365 = vmatprep.subr.mxu0 0.0
    %v366 = vand.u32 %v78, 4294901760
    %v367 = vsub.f32 %v78, %v366
    %368 = vmatpush1.msra.mxu0 %v367
    %369 = vmatprep.subr.mxu0 0.0
    %v370 = vand.u32 %v77, 4294901760
    %v371 = vsub.f32 %v77, %v370
    %372 = vmatpush1.msra.mxu0 %v371
    %373 = vmatprep.subr.mxu0 0.0
    %v374 = vand.u32 %v76, 4294901760
    %v375 = vsub.f32 %v76, %v374
    %376 = vmatpush1.msra.mxu0 %v375
    %377 = vmatprep.subr.mxu0 0.0
    %v378 = vand.u32 %v75, 4294901760
    %v379 = vsub.f32 %v75, %v378
    %380 = vmatpush1.msra.mxu0 %v379
    %381 = vmatprep.subr.mxu0 0.0
    %v382 = vand.u32 %v74, 4294901760
    %v383 = vsub.f32 %v74, %v382
    %384 = vmatpush1.msra.mxu0 %v383
    %385 = vmatprep.subr.mxu0 0.0
    %v386 = vand.u32 %v73, 4294901760
    %v387 = vsub.f32 %v73, %v386
    %388 = vmatpush1.msra.mxu0 %v387
    %389 = vmatprep.subr.mxu0 0.0
    %v390 = vand.u32 %v72, 4294901760
    %v391 = vsub.f32 %v72, %v390
    %392 = vmatpush1.msra.mxu0 %v391
    %393 = vmatprep.subr.mxu0 0.0
    %v394 = vand.u32 %v71, 4294901760
    %v395 = vsub.f32 %v71, %v394
    %396 = vmatpush1.msra.mxu0 %v395
    %397 = vmatprep.subr.mxu0 0.0
    %v398 = vand.u32 %v70, 4294901760
    %v399 = vsub.f32 %v70, %v398
    %400 = vmatpush1.msra.mxu0 %v399
    %401 = vmatprep.subr.mxu0 0.0
    %v402 = vand.u32 %v69, 4294901760
    %v403 = vsub.f32 %v69, %v402
    %404 = vmatpush1.msra.mxu0 %v403
    %405 = vmatprep.subr.mxu0 0.0
    %v406 = vand.u32 %v68, 4294901760
    %v407 = vsub.f32 %v68, %v406
    %408 = vmatpush1.msra.mxu0 %v407
    %409 = vmatprep.subr.mxu0 0.0
    %v410 = vand.u32 %v67, 4294901760
    %v411 = vsub.f32 %v67, %v410
    %412 = vmatpush1.msra.mxu0 %v411
    %413 = vmatprep.subr.mxu0 0.0
    %v414 = vand.u32 %v66, 4294901760
    %v415 = vsub.f32 %v66, %v414
    %416 = vmatpush1.msra.mxu0 %v415
    %417 = vmatprep.subr.mxu0 0.0
    %v418 = vand.u32 %v65, 4294901760
    %v419 = vsub.f32 %v65, %v418
    %420 = vmatpush1.msra.mxu0 %v419
    %421 = vmatprep.subr.mxu0 0.0
    %v422 = vand.u32 %v64, 4294901760
    %v423 = vsub.f32 %v64, %v422
    %424 = vmatpush1.msra.mxu0 %v423
    %425 = vmatprep.subr.mxu0 0.0
    %426 = vmatpush2.msra.mxu0 0.0
    %427 = vmatprep.subr.mxu0 0.0
    %428 = vmatpush2.msra.mxu0 0.0
    %429 = vmatprep.subr.mxu0 0.0
    %430 = vmatpush2.msra.mxu0 0.0
    %431 = vmatprep.subr.mxu0 0.0
    %432 = vmatpush2.msra.mxu0 0.0
    %433 = vmatprep.subr.mxu0 0.0
    %434 = vmatpush2.msra.mxu0 0.0
    %435 = vmatprep.subr.mxu0 0.0
    %436 = vmatpush2.msra.mxu0 0.0
    %437 = vmatprep.subr.mxu0 0.0
    %438 = vmatpush2.msra.mxu0 0.0
    %439 = vmatprep.subr.mxu0 0.0
    %440 = vmatpush2.msra.mxu0 0.0
    %441 = vmatprep.subr.mxu0 0.0
    %442 = vmatpush2.msra.mxu0 0.0
    %443 = vmatprep.subr.mxu0 0.0
    %444 = vmatpush2.msra.mxu0 0.0
    %445 = vmatprep.subr.mxu0 0.0
    %446 = vmatpush2.msra.mxu0 0.0
    %447 = vmatprep.subr.mxu0 0.0
    %448 = vmatpush2.msra.mxu0 0.0
    %449 = vmatprep.subr.mxu0 0.0
    %450 = vmatpush2.msra.mxu0 0.0
    %451 = vmatprep.subr.mxu0 0.0
    %452 = vmatpush2.msra.mxu0 0.0
    %453 = vmatprep.subr.mxu0 0.0
    %454 = vmatpush2.msra.mxu0 0.0
    %455 = vmatprep.subr.mxu0 0.0
    %456 = vmatpush2.msra.mxu0 0.0
    %457 = vmatprep.mubr.f32.mxu0 0.0
    %v458 = vand.u32 %v62, 4294901760
    %v459 = vsub.f32 %v62, %v458
    %460 = vmatmul.mubr.f32.gmra.mxu0 %v459
    %v461 = vpop.f32.mrf.mxu0
    %v462 = vadd.f32 %v352, %v461
    %v463 = vpop.f32.mrf.mxu0
    %464 = vmatprep.mubr.f32.mxu0 0.0
    %v465 = vand.u32 %v63, 4294901760
    %v466 = vsub.f32 %v63, %v465
    %467 = vmatmul.mubr.f32.gmra.mxu0 %v466
    %v468 = vpop.f32.mrf.mxu0
    %v469 = vadd.f32 %v358, %v468
    %v470 = vpop.f32.mrf.mxu0
    %471 = vdwg.mxu0
    %472 = vmatprep.subr.mxu0 0.0
    %v473 = vand.u32 %v79, 4294901760
    %474 = vmatpush1.msra.mxu0 %v473
    %475 = vmatprep.subr.mxu0 0.0
    %v476 = vand.u32 %v78, 4294901760
    %477 = vmatpush1.msra.mxu0 %v476
    %478 = vmatprep.subr.mxu0 0.0
    %v479 = vand.u32 %v77, 4294901760
    %480 = vmatpush1.msra.mxu0 %v479
    %481 = vmatprep.subr.mxu0 0.0
    %v482 = vand.u32 %v76, 4294901760
    %483 = vmatpush1.msra.mxu0 %v482
    %484 = vmatprep.subr.mxu0 0.0
    %v485 = vand.u32 %v75, 4294901760
    %486 = vmatpush1.msra.mxu0 %v485
    %487 = vmatprep.subr.mxu0 0.0
    %v488 = vand.u32 %v74, 4294901760
    %489 = vmatpush1.msra.mxu0 %v488
    %490 = vmatprep.subr.mxu0 0.0
    %v491 = vand.u32 %v73, 4294901760
    %492 = vmatpush1.msra.mxu0 %v491
    %493 = vmatprep.subr.mxu0 0.0
    %v494 = vand.u32 %v72, 4294901760
    %495 = vmatpush1.msra.mxu0 %v494
    %496 = vmatprep.subr.mxu0 0.0
    %v497 = vand.u32 %v71, 4294901760
    %498 = vmatpush1.msra.mxu0 %v497
    %499 = vmatprep.subr.mxu0 0.0
    %v500 = vand.u32 %v70, 4294901760
    %501 = vmatpush1.msra.mxu0 %v500
    %502 = vmatprep.subr.mxu0 0.0
    %v503 = vand.u32 %v69, 4294901760
    %504 = vmatpush1.msra.mxu0 %v503
    %505 = vmatprep.subr.mxu0 0.0
    %v506 = vand.u32 %v68, 4294901760
    %507 = vmatpush1.msra.mxu0 %v506
    %508 = vmatprep.subr.mxu0 0.0
    %v509 = vand.u32 %v67, 4294901760
    %510 = vmatpush1.msra.mxu0 %v509
    %511 = vmatprep.subr.mxu0 0.0
    %v512 = vand.u32 %v66, 4294901760
    %513 = vmatpush1.msra.mxu0 %v512
    %514 = vmatprep.subr.mxu0 0.0
    %v515 = vand.u32 %v65, 4294901760
    %516 = vmatpush1.msra.mxu0 %v515
    %517 = vmatprep.subr.mxu0 0.0
    %v518 = vand.u32 %v64, 4294901760
    %519 = vmatpush1.msra.mxu0 %v518
    %520 = vmatprep.subr.mxu0 0.0
    %521 = vmatpush2.msra.mxu0 0.0
    %522 = vmatprep.subr.mxu0 0.0
    %523 = vmatpush2.msra.mxu0 0.0
    %524 = vmatprep.subr.mxu0 0.0
    %525 = vmatpush2.msra.mxu0 0.0
    %526 = vmatprep.subr.mxu0 0.0
    %527 = vmatpush2.msra.mxu0 0.0
    %528 = vmatprep.subr.mxu0 0.0
    %529 = vmatpush2.msra.mxu0 0.0
    %530 = vmatprep.subr.mxu0 0.0
    %531 = vmatpush2.msra.mxu0 0.0
    %532 = vmatprep.subr.mxu0 0.0
    %533 = vmatpush2.msra.mxu0 0.0
    %534 = vmatprep.subr.mxu0 0.0
    %535 = vmatpush2.msra.mxu0 0.0
    %536 = vmatprep.subr.mxu0 0.0
    %537 = vmatpush2.msra.mxu0 0.0
    %538 = vmatprep.subr.mxu0 0.0
    %539 = vmatpush2.msra.mxu0 0.0
    %540 = vmatprep.subr.mxu0 0.0
    %541 = vmatpush2.msra.mxu0 0.0
    %542 = vmatprep.subr.mxu0 0.0
    %543 = vmatpush2.msra.mxu0 0.0
    %544 = vmatprep.subr.mxu0 0.0
    %545 = vmatpush2.msra.mxu0 0.0
    %546 = vmatprep.subr.mxu0 0.0
    %547 = vmatpush2.msra.mxu0 0.0
    %548 = vmatprep.subr.mxu0 0.0
    %549 = vmatpush2.msra.mxu0 0.0
    %550 = vmatprep.subr.mxu0 0.0
    %551 = vmatpush2.msra.mxu0 0.0
    %552 = vmatprep.mubr.f32.mxu0 0.0
    %v553 = vand.u32 %v62, 4294901760
    %v554 = vsub.f32 %v62, %v553
    %v555 = vand.u32 %v554, 4294901760
    %556 = vmatmul.mubr.f32.gmra.mxu0 %v555
    %v557 = vpop.f32.mrf.mxu0
    %v558 = vadd.f32 %v462, %v557
    %v559 = vpop.f32.mrf.mxu0
    %560 = vmatprep.mubr.f32.mxu0 0.0
    %v561 = vand.u32 %v63, 4294901760
    %v562 = vsub.f32 %v63, %v561
    %v563 = vand.u32 %v562, 4294901760
    %564 = vmatmul.mubr.f32.gmra.mxu0 %v563
    %v565 = vpop.f32.mrf.mxu0
    %v566 = vadd.f32 %v469, %v565
    %v567 = vpop.f32.mrf.mxu0
    %568 = vdwg.mxu0
    %569 = vmatprep.subr.mxu0 0.0
    %v570 = vand.u32 %v79, 4294901760
    %v571 = vsub.f32 %v79, %v570
    %v572 = vand.u32 %v571, 4294901760
    %573 = vmatpush1.msra.mxu0 %v572
    %574 = vmatprep.subr.mxu0 0.0
    %v575 = vand.u32 %v78, 4294901760
    %v576 = vsub.f32 %v78, %v575
    %v577 = vand.u32 %v576, 4294901760
    %578 = vmatpush1.msra.mxu0 %v577
    %579 = vmatprep.subr.mxu0 0.0
    %v580 = vand.u32 %v77, 4294901760
    %v581 = vsub.f32 %v77, %v580
    %v582 = vand.u32 %v581, 4294901760
    %583 = vmatpush1.msra.mxu0 %v582
    %584 = vmatprep.subr.mxu0 0.0
    %v585 = vand.u32 %v76, 4294901760
    %v586 = vsub.f32 %v76, %v585
    %v587 = vand.u32 %v586, 4294901760
    %588 = vmatpush1.msra.mxu0 %v587
    %589 = vmatprep.subr.mxu0 0.0
    %v590 = vand.u32 %v75, 4294901760
    %v591 = vsub.f32 %v75, %v590
    %v592 = vand.u32 %v591, 4294901760
    %593 = vmatpush1.msra.mxu0 %v592
    %594 = vmatprep.subr.mxu0 0.0
    %v595 = vand.u32 %v74, 4294901760
    %v596 = vsub.f32 %v74, %v595
    %v597 = vand.u32 %v596, 4294901760
    %598 = vmatpush1.msra.mxu0 %v597
    %599 = vmatprep.subr.mxu0 0.0
    %v600 = vand.u32 %v73, 4294901760
    %v601 = vsub.f32 %v73, %v600
    %v602 = vand.u32 %v601, 4294901760
    %603 = vmatpush1.msra.mxu0 %v602
    %604 = vmatprep.subr.mxu0 0.0
    %v605 = vand.u32 %v72, 4294901760
    %v606 = vsub.f32 %v72, %v605
    %v607 = vand.u32 %v606, 4294901760
    %608 = vmatpush1.msra.mxu0 %v607
    %609 = vmatprep.subr.mxu0 0.0
    %v610 = vand.u32 %v71, 4294901760
    %v611 = vsub.f32 %v71, %v610
    %v612 = vand.u32 %v611, 4294901760
    %613 = vmatpush1.msra.mxu0 %v612
    %614 = vmatprep.subr.mxu0 0.0
    %v615 = vand.u32 %v70, 4294901760
    %v616 = vsub.f32 %v70, %v615
    %v617 = vand.u32 %v616, 4294901760
    %618 = vmatpush1.msra.mxu0 %v617
    %619 = vmatprep.subr.mxu0 0.0
    %v620 = vand.u32 %v69, 4294901760
    %v621 = vsub.f32 %v69, %v620
    %v622 = vand.u32 %v621, 4294901760
    %623 = vmatpush1.msra.mxu0 %v622
    %624 = vmatprep.subr.mxu0 0.0
    %v625 = vand.u32 %v68, 4294901760
    %v626 = vsub.f32 %v68, %v625
    %v627 = vand.u32 %v626, 4294901760
    %628 = vmatpush1.msra.mxu0 %v627
    %629 = vmatprep.subr.mxu0 0.0
    %v630 = vand.u32 %v67, 4294901760
    %v631 = vsub.f32 %v67, %v630
    %v632 = vand.u32 %v631, 4294901760
    %633 = vmatpush1.msra.mxu0 %v632
    %634 = vmatprep.subr.mxu0 0.0
    %v635 = vand.u32 %v66, 4294901760
    %v636 = vsub.f32 %v66, %v635
    %v637 = vand.u32 %v636, 4294901760
    %638 = vmatpush1.msra.mxu0 %v637
    %639 = vmatprep.subr.mxu0 0.0
    %v640 = vand.u32 %v65, 4294901760
    %v641 = vsub.f32 %v65, %v640
    %v642 = vand.u32 %v641, 4294901760
    %643 = vmatpush1.msra.mxu0 %v642
    %644 = vmatprep.subr.mxu0 0.0
    %v645 = vand.u32 %v64, 4294901760
    %v646 = vsub.f32 %v64, %v645
    %v647 = vand.u32 %v646, 4294901760
    %648 = vmatpush1.msra.mxu0 %v647
    %649 = vmatprep.subr.mxu0 0.0
    %650 = vmatpush2.msra.mxu0 0.0
    %651 = vmatprep.subr.mxu0 0.0
    %652 = vmatpush2.msra.mxu0 0.0
    %653 = vmatprep.subr.mxu0 0.0
    %654 = vmatpush2.msra.mxu0 0.0
    %655 = vmatprep.subr.mxu0 0.0
    %656 = vmatpush2.msra.mxu0 0.0
    %657 = vmatprep.subr.mxu0 0.0
    %658 = vmatpush2.msra.mxu0 0.0
    %659 = vmatprep.subr.mxu0 0.0
    %660 = vmatpush2.msra.mxu0 0.0
    %661 = vmatprep.subr.mxu0 0.0
    %662 = vmatpush2.msra.mxu0 0.0
    %663 = vmatprep.subr.mxu0 0.0
    %664 = vmatpush2.msra.mxu0 0.0
    %665 = vmatprep.subr.mxu0 0.0
    %666 = vmatpush2.msra.mxu0 0.0
    %667 = vmatprep.subr.mxu0 0.0
    %668 = vmatpush2.msra.mxu0 0.0
    %669 = vmatprep.subr.mxu0 0.0
    %670 = vmatpush2.msra.mxu0 0.0
    %671 = vmatprep.subr.mxu0 0.0
    %672 = vmatpush2.msra.mxu0 0.0
    %673 = vmatprep.subr.mxu0 0.0
    %674 = vmatpush2.msra.mxu0 0.0
    %675 = vmatprep.subr.mxu0 0.0
    %676 = vmatpush2.msra.mxu0 0.0
    %677 = vmatprep.subr.mxu0 0.0
    %678 = vmatpush2.msra.mxu0 0.0
    %679 = vmatprep.subr.mxu0 0.0
    %680 = vmatpush2.msra.mxu0 0.0
    %681 = vmatprep.mubr.f32.mxu0 0.0
    %v682 = vand.u32 %v62, 4294901760
    %683 = vmatmul.mubr.f32.gmra.mxu0 %v682
    %v684 = vpop.f32.mrf.mxu0
    %v685 = vadd.f32 %v558, %v684
    %v686 = vpop.f32.mrf.mxu0
    %687 = vmatprep.mubr.f32.mxu0 0.0
    %v688 = vand.u32 %v63, 4294901760
    %689 = vmatmul.mubr.f32.gmra.mxu0 %v688
    %v690 = vpop.f32.mrf.mxu0
    %v691 = vadd.f32 %v566, %v690
    %v692 = vpop.f32.mrf.mxu0
    %693 = vdwg.mxu0
    %694 = vmatprep.subr.mxu0 0.0
    %v695 = vand.u32 %v79, 4294901760
    %696 = vmatpush1.msra.mxu0 %v695
    %697 = vmatprep.subr.mxu0 0.0
    %v698 = vand.u32 %v78, 4294901760
    %699 = vmatpush1.msra.mxu0 %v698
    %700 = vmatprep.subr.mxu0 0.0
    %v701 = vand.u32 %v77, 4294901760
    %702 = vmatpush1.msra.mxu0 %v701
    %703 = vmatprep.subr.mxu0 0.0
    %v704 = vand.u32 %v76, 4294901760
    %705 = vmatpush1.msra.mxu0 %v704
    %706 = vmatprep.subr.mxu0 0.0
    %v707 = vand.u32 %v75, 4294901760
    %708 = vmatpush1.msra.mxu0 %v707
    %709 = vmatprep.subr.mxu0 0.0
    %v710 = vand.u32 %v74, 4294901760
    %711 = vmatpush1.msra.mxu0 %v710
    %712 = vmatprep.subr.mxu0 0.0
    %v713 = vand.u32 %v73, 4294901760
    %714 = vmatpush1.msra.mxu0 %v713
    %715 = vmatprep.subr.mxu0 0.0
    %v716 = vand.u32 %v72, 4294901760
    %717 = vmatpush1.msra.mxu0 %v716
    %718 = vmatprep.subr.mxu0 0.0
    %v719 = vand.u32 %v71, 4294901760
    %720 = vmatpush1.msra.mxu0 %v719
    %721 = vmatprep.subr.mxu0 0.0
    %v722 = vand.u32 %v70, 4294901760
    %723 = vmatpush1.msra.mxu0 %v722
    %724 = vmatprep.subr.mxu0 0.0
    %v725 = vand.u32 %v69, 4294901760
    %726 = vmatpush1.msra.mxu0 %v725
    %727 = vmatprep.subr.mxu0 0.0
    %v728 = vand.u32 %v68, 4294901760
    %729 = vmatpush1.msra.mxu0 %v728
    %730 = vmatprep.subr.mxu0 0.0
    %v731 = vand.u32 %v67, 4294901760
    %732 = vmatpush1.msra.mxu0 %v731
    %733 = vmatprep.subr.mxu0 0.0
    %v734 = vand.u32 %v66, 4294901760
    %735 = vmatpush1.msra.mxu0 %v734
    %736 = vmatprep.subr.mxu0 0.0
    %v737 = vand.u32 %v65, 4294901760
    %738 = vmatpush1.msra.mxu0 %v737
    %739 = vmatprep.subr.mxu0 0.0
    %v740 = vand.u32 %v64, 4294901760
    %741 = vmatpush1.msra.mxu0 %v740
    %742 = vmatprep.subr.mxu0 0.0
    %743 = vmatpush2.msra.mxu0 0.0
    %744 = vmatprep.subr.mxu0 0.0
    %745 = vmatpush2.msra.mxu0 0.0
    %746 = vmatprep.subr.mxu0 0.0
    %747 = vmatpush2.msra.mxu0 0.0
    %748 = vmatprep.subr.mxu0 0.0
    %749 = vmatpush2.msra.mxu0 0.0
    %750 = vmatprep.subr.mxu0 0.0
    %751 = vmatpush2.msra.mxu0 0.0
    %752 = vmatprep.subr.mxu0 0.0
    %753 = vmatpush2.msra.mxu0 0.0
    %754 = vmatprep.subr.mxu0 0.0
    %755 = vmatpush2.msra.mxu0 0.0
    %756 = vmatprep.subr.mxu0 0.0
    %757 = vmatpush2.msra.mxu0 0.0
    %758 = vmatprep.subr.mxu0 0.0
    %759 = vmatpush2.msra.mxu0 0.0
    %760 = vmatprep.subr.mxu0 0.0
    %761 = vmatpush2.msra.mxu0 0.0
    %762 = vmatprep.subr.mxu0 0.0
    %763 = vmatpush2.msra.mxu0 0.0
    %764 = vmatprep.subr.mxu0 0.0
    %765 = vmatpush2.msra.mxu0 0.0
    %766 = vmatprep.subr.mxu0 0.0
    %767 = vmatpush2.msra.mxu0 0.0
    %768 = vmatprep.subr.mxu0 0.0
    %769 = vmatpush2.msra.mxu0 0.0
    %770 = vmatprep.subr.mxu0 0.0
    %771 = vmatpush2.msra.mxu0 0.0
    %772 = vmatprep.subr.mxu0 0.0
    %773 = vmatpush2.msra.mxu0 0.0
    %774 = vmatprep.mubr.f32.mxu0 0.0
    %v775 = vand.u32 %v62, 4294901760
    %776 = vmatmul.mubr.f32.gmra.mxu0 %v775
    %v777 = vpop.f32.mrf.mxu0
    %v778 = vadd.f32 %v685, %v777
    %v779 = vpop.f32.mrf.mxu0
    %780 = vmatprep.mubr.f32.mxu0 0.0
    %v781 = vand.u32 %v63, 4294901760
    %782 = vmatmul.mubr.f32.gmra.mxu0 %v781
    %v783 = vpop.f32.mrf.mxu0
    %v784 = vadd.f32 %v691, %v783
    %v785 = vpop.f32.mrf.mxu0
    %786 = vdwg.mxu0
    %v787 = vxor.u32 %v778, 2147483648
    %v788 = vxor.u32 %v784, 2147483648
    %v789 = vmul.f32 %v787, 1.442695
    %v790 = vpow.pop %v789
    %v791 = vmul.f32 %v788, 1.442695
    %v792 = vpow.pop %v791
    %v793 = vadd.f32 %v790, 1.0
    %v794 = vadd.f32 %v792, 1.0
    %v795 = vrcp.pop %v793
    %v796 = vmul.f32 1.0, %v795
    %v797 = vrcp.pop %v794
    %v798 = vmul.f32 1.0, %v797
    %v799 = vld [vmem:[%s4] sm:$0x1]
    %v801 = vlaneseq
    %v802 = vshrl.u32 %v801, 7
    %v803 = vsub.s32 0, %v802
    %v804 = vrot.slane %v799, %v803
    %806 = vmatprep.subr.mxu0 0.0
    %v807 = vand.u32 %v95, 4294901760
    %808 = vmatpush1.msra.mxu0 %v807
    %809 = vmatprep.subr.mxu0 0.0
    %v810 = vand.u32 %v94, 4294901760
    %811 = vmatpush1.msra.mxu0 %v810
    %812 = vmatprep.subr.mxu0 0.0
    %v813 = vand.u32 %v93, 4294901760
    %814 = vmatpush1.msra.mxu0 %v813
    %815 = vmatprep.subr.mxu0 0.0
    %v816 = vand.u32 %v92, 4294901760
    %817 = vmatpush1.msra.mxu0 %v816
    %818 = vmatprep.subr.mxu0 0.0
    %v819 = vand.u32 %v91, 4294901760
    %820 = vmatpush1.msra.mxu0 %v819
    %821 = vmatprep.subr.mxu0 0.0
    %v822 = vand.u32 %v90, 4294901760
    %823 = vmatpush1.msra.mxu0 %v822
    %824 = vmatprep.subr.mxu0 0.0
    %v825 = vand.u32 %v89, 4294901760
    %826 = vmatpush1.msra.mxu0 %v825
    %827 = vmatprep.subr.mxu0 0.0
    %v828 = vand.u32 %v88, 4294901760
    %829 = vmatpush1.msra.mxu0 %v828
    %830 = vmatprep.subr.mxu0 0.0
    %v831 = vand.u32 %v87, 4294901760
    %832 = vmatpush1.msra.mxu0 %v831
    %833 = vmatprep.subr.mxu0 0.0
    %v834 = vand.u32 %v86, 4294901760
    %835 = vmatpush1.msra.mxu0 %v834
    %836 = vmatprep.subr.mxu0 0.0
    %v837 = vand.u32 %v85, 4294901760
    %838 = vmatpush1.msra.mxu0 %v837
    %839 = vmatprep.subr.mxu0 0.0
    %v840 = vand.u32 %v84, 4294901760
    %841 = vmatpush1.msra.mxu0 %v840
    %842 = vmatprep.subr.mxu0 0.0
    %v843 = vand.u32 %v83, 4294901760
    %844 = vmatpush1.msra.mxu0 %v843
    %845 = vmatprep.subr.mxu0 0.0
    %v846 = vand.u32 %v82, 4294901760
    %847 = vmatpush1.msra.mxu0 %v846
    %848 = vmatprep.subr.mxu0 0.0
    %v849 = vand.u32 %v81, 4294901760
    %850 = vmatpush1.msra.mxu0 %v849
    %851 = vmatprep.subr.mxu0 0.0
    %v852 = vand.u32 %v80, 4294901760
    %853 = vmatpush1.msra.mxu0 %v852
    %854 = vmatprep.subr.mxu0 0.0
    %855 = vmatpush2.msra.mxu0 0.0
    %856 = vmatprep.subr.mxu0 0.0
    %857 = vmatpush2.msra.mxu0 0.0
    %858 = vmatprep.subr.mxu0 0.0
    %859 = vmatpush2.msra.mxu0 0.0
    %860 = vmatprep.subr.mxu0 0.0
    %861 = vmatpush2.msra.mxu0 0.0
    %862 = vmatprep.subr.mxu0 0.0
    %863 = vmatpush2.msra.mxu0 0.0
    %864 = vmatprep.subr.mxu0 0.0
    %865 = vmatpush2.msra.mxu0 0.0
    %866 = vmatprep.subr.mxu0 0.0
    %867 = vmatpush2.msra.mxu0 0.0
    %868 = vmatprep.subr.mxu0 0.0
    %869 = vmatpush2.msra.mxu0 0.0
    %870 = vmatprep.subr.mxu0 0.0
    %871 = vmatpush2.msra.mxu0 0.0
    %872 = vmatprep.subr.mxu0 0.0
    %873 = vmatpush2.msra.mxu0 0.0
    %874 = vmatprep.subr.mxu0 0.0
    %875 = vmatpush2.msra.mxu0 0.0
    %876 = vmatprep.subr.mxu0 0.0
    %877 = vmatpush2.msra.mxu0 0.0
    %878 = vmatprep.subr.mxu0 0.0
    %879 = vmatpush2.msra.mxu0 0.0
    %880 = vmatprep.subr.mxu0 0.0
    %881 = vmatpush2.msra.mxu0 0.0
    %882 = vmatprep.subr.mxu0 0.0
    %883 = vmatpush2.msra.mxu0 0.0
    %884 = vmatprep.subr.mxu0 0.0
    %885 = vmatpush2.msra.mxu0 0.0
    %886 = vmatprep.mubr.f32.mxu0 0.0
    %v887 = vand.u32 %v62, 4294901760
    %v888 = vsub.f32 %v62, %v887
    %v889 = vand.u32 %v888, 4294901760
    %v890 = vsub.f32 %v888, %v889
    %v891 = vand.u32 %v890, 4294901760
    %892 = vmatmul.mubr.f32.gmra.mxu0 %v891
    %v893 = vpop.f32.mrf.mxu0
    %v894 = vadd.f32 %v804, %v893
    %v895 = vpop.f32.mrf.mxu0
    %896 = vmatprep.mubr.f32.mxu0 0.0
    %v897 = vand.u32 %v63, 4294901760
    %v898 = vsub.f32 %v63, %v897
    %v899 = vand.u32 %v898, 4294901760
    %v900 = vsub.f32 %v898, %v899
    %v901 = vand.u32 %v900, 4294901760
    %902 = vmatmul.mubr.f32.gmra.mxu0 %v901
    %v903 = vpop.f32.mrf.mxu0
    %v904 = vadd.f32 %v804, %v903
    %v905 = vpop.f32.mrf.mxu0
    %906 = vdwg.mxu0
    %907 = vmatprep.subr.mxu0 0.0
    %v908 = vand.u32 %v95, 4294901760
    %v909 = vsub.f32 %v95, %v908
    %v910 = vand.u32 %v909, 4294901760
    %v911 = vsub.f32 %v909, %v910
    %v912 = vand.u32 %v911, 4294901760
    %913 = vmatpush1.msra.mxu0 %v912
    %914 = vmatprep.subr.mxu0 0.0
    %v915 = vand.u32 %v94, 4294901760
    %v916 = vsub.f32 %v94, %v915
    %v917 = vand.u32 %v916, 4294901760
    %v918 = vsub.f32 %v916, %v917
    %v919 = vand.u32 %v918, 4294901760
    %920 = vmatpush1.msra.mxu0 %v919
    %921 = vmatprep.subr.mxu0 0.0
    %v922 = vand.u32 %v93, 4294901760
    %v923 = vsub.f32 %v93, %v922
    %v924 = vand.u32 %v923, 4294901760
    %v925 = vsub.f32 %v923, %v924
    %v926 = vand.u32 %v925, 4294901760
    %927 = vmatpush1.msra.mxu0 %v926
    %928 = vmatprep.subr.mxu0 0.0
    %v929 = vand.u32 %v92, 4294901760
    %v930 = vsub.f32 %v92, %v929
    %v931 = vand.u32 %v930, 4294901760
    %v932 = vsub.f32 %v930, %v931
    %v933 = vand.u32 %v932, 4294901760
    %934 = vmatpush1.msra.mxu0 %v933
    %935 = vmatprep.subr.mxu0 0.0
    %v936 = vand.u32 %v91, 4294901760
    %v937 = vsub.f32 %v91, %v936
    %v938 = vand.u32 %v937, 4294901760
    %v939 = vsub.f32 %v937, %v938
    %v940 = vand.u32 %v939, 4294901760
    %941 = vmatpush1.msra.mxu0 %v940
    %942 = vmatprep.subr.mxu0 0.0
    %v943 = vand.u32 %v90, 4294901760
    %v944 = vsub.f32 %v90, %v943
    %v945 = vand.u32 %v944, 4294901760
    %v946 = vsub.f32 %v944, %v945
    %v947 = vand.u32 %v946, 4294901760
    %948 = vmatpush1.msra.mxu0 %v947
    %949 = vmatprep.subr.mxu0 0.0
    %v950 = vand.u32 %v89, 4294901760
    %v951 = vsub.f32 %v89, %v950
    %v952 = vand.u32 %v951, 4294901760
    %v953 = vsub.f32 %v951, %v952
    %v954 = vand.u32 %v953, 4294901760
    %955 = vmatpush1.msra.mxu0 %v954
    %956 = vmatprep.subr.mxu0 0.0
    %v957 = vand.u32 %v88, 4294901760
    %v958 = vsub.f32 %v88, %v957
    %v959 = vand.u32 %v958, 4294901760
    %v960 = vsub.f32 %v958, %v959
    %v961 = vand.u32 %v960, 4294901760
    %962 = vmatpush1.msra.mxu0 %v961
    %963 = vmatprep.subr.mxu0 0.0
    %v964 = vand.u32 %v87, 4294901760
    %v965 = vsub.f32 %v87, %v964
    %v966 = vand.u32 %v965, 4294901760
    %v967 = vsub.f32 %v965, %v966
    %v968 = vand.u32 %v967, 4294901760
    %969 = vmatpush1.msra.mxu0 %v968
    %970 = vmatprep.subr.mxu0 0.0
    %v971 = vand.u32 %v86, 4294901760
    %v972 = vsub.f32 %v86, %v971
    %v973 = vand.u32 %v972, 4294901760
    %v974 = vsub.f32 %v972, %v973
    %v975 = vand.u32 %v974, 4294901760
    %976 = vmatpush1.msra.mxu0 %v975
    %977 = vmatprep.subr.mxu0 0.0
    %v978 = vand.u32 %v85, 4294901760
    %v979 = vsub.f32 %v85, %v978
    %v980 = vand.u32 %v979, 4294901760
    %v981 = vsub.f32 %v979, %v980
    %v982 = vand.u32 %v981, 4294901760
    %983 = vmatpush1.msra.mxu0 %v982
    %984 = vmatprep.subr.mxu0 0.0
    %v985 = vand.u32 %v84, 4294901760
    %v986 = vsub.f32 %v84, %v985
    %v987 = vand.u32 %v986, 4294901760
    %v988 = vsub.f32 %v986, %v987
    %v989 = vand.u32 %v988, 4294901760
    %990 = vmatpush1.msra.mxu0 %v989
    %991 = vmatprep.subr.mxu0 0.0
    %v992 = vand.u32 %v83, 4294901760
    %v993 = vsub.f32 %v83, %v992
    %v994 = vand.u32 %v993, 4294901760
    %v995 = vsub.f32 %v993, %v994
    %v996 = vand.u32 %v995, 4294901760
    %997 = vmatpush1.msra.mxu0 %v996
    %998 = vmatprep.subr.mxu0 0.0
    %v999 = vand.u32 %v82, 4294901760
    %v1000 = vsub.f32 %v82, %v999
    %v1001 = vand.u32 %v1000, 4294901760
    %v1002 = vsub.f32 %v1000, %v1001
    %v1003 = vand.u32 %v1002, 4294901760
    %1004 = vmatpush1.msra.mxu0 %v1003
    %1005 = vmatprep.subr.mxu0 0.0
    %v1006 = vand.u32 %v81, 4294901760
    %v1007 = vsub.f32 %v81, %v1006
    %v1008 = vand.u32 %v1007, 4294901760
    %v1009 = vsub.f32 %v1007, %v1008
    %v1010 = vand.u32 %v1009, 4294901760
    %1011 = vmatpush1.msra.mxu0 %v1010
    %1012 = vmatprep.subr.mxu0 0.0
    %v1013 = vand.u32 %v80, 4294901760
    %v1014 = vsub.f32 %v80, %v1013
    %v1015 = vand.u32 %v1014, 4294901760
    %v1016 = vsub.f32 %v1014, %v1015
    %v1017 = vand.u32 %v1016, 4294901760
    %1018 = vmatpush1.msra.mxu0 %v1017
    %1019 = vmatprep.subr.mxu0 0.0
    %1020 = vmatpush2.msra.mxu0 0.0
    %1021 = vmatprep.subr.mxu0 0.0
    %1022 = vmatpush2.msra.mxu0 0.0
    %1023 = vmatprep.subr.mxu0 0.0
    %1024 = vmatpush2.msra.mxu0 0.0
    %1025 = vmatprep.subr.mxu0 0.0
    %1026 = vmatpush2.msra.mxu0 0.0
    %1027 = vmatprep.subr.mxu0 0.0
    %1028 = vmatpush2.msra.mxu0 0.0
    %1029 = vmatprep.subr.mxu0 0.0
    %1030 = vmatpush2.msra.mxu0 0.0
    %1031 = vmatprep.subr.mxu0 0.0
    %1032 = vmatpush2.msra.mxu0 0.0
    %1033 = vmatprep.subr.mxu0 0.0
    %1034 = vmatpush2.msra.mxu0 0.0
    %1035 = vmatprep.subr.mxu0 0.0
    %1036 = vmatpush2.msra.mxu0 0.0
    %1037 = vmatprep.subr.mxu0 0.0
    %1038 = vmatpush2.msra.mxu0 0.0
    %1039 = vmatprep.subr.mxu0 0.0
    %1040 = vmatpush2.msra.mxu0 0.0
    %1041 = vmatprep.subr.mxu0 0.0
    %1042 = vmatpush2.msra.mxu0 0.0
    %1043 = vmatprep.subr.mxu0 0.0
    %1044 = vmatpush2.msra.mxu0 0.0
    %1045 = vmatprep.subr.mxu0 0.0
    %1046 = vmatpush2.msra.mxu0 0.0
    %1047 = vmatprep.subr.mxu0 0.0
    %1048 = vmatpush2.msra.mxu0 0.0
    %1049 = vmatprep.subr.mxu0 0.0
    %1050 = vmatpush2.msra.mxu0 0.0
    %1051 = vmatprep.mubr.f32.mxu0 0.0
    %v1052 = vand.u32 %v62, 4294901760
    %1053 = vmatmul.mubr.f32.gmra.mxu0 %v1052
    %v1054 = vpop.f32.mrf.mxu0
    %v1055 = vadd.f32 %v894, %v1054
    %v1056 = vpop.f32.mrf.mxu0
    %1057 = vmatprep.mubr.f32.mxu0 0.0
    %v1058 = vand.u32 %v63, 4294901760
    %1059 = vmatmul.mubr.f32.gmra.mxu0 %v1058
    %v1060 = vpop.f32.mrf.mxu0
    %v1061 = vadd.f32 %v904, %v1060
    %v1062 = vpop.f32.mrf.mxu0
    %1063 = vdwg.mxu0
    %1064 = vmatprep.subr.mxu0 0.0
    %v1065 = vand.u32 %v95, 4294901760
    %v1066 = vsub.f32 %v95, %v1065
    %1067 = vmatpush1.msra.mxu0 %v1066
    %1068 = vmatprep.subr.mxu0 0.0
    %v1069 = vand.u32 %v94, 4294901760
    %v1070 = vsub.f32 %v94, %v1069
    %1071 = vmatpush1.msra.mxu0 %v1070
    %1072 = vmatprep.subr.mxu0 0.0
    %v1073 = vand.u32 %v93, 4294901760
    %v1074 = vsub.f32 %v93, %v1073
    %1075 = vmatpush1.msra.mxu0 %v1074
    %1076 = vmatprep.subr.mxu0 0.0
    %v1077 = vand.u32 %v92, 4294901760
    %v1078 = vsub.f32 %v92, %v1077
    %1079 = vmatpush1.msra.mxu0 %v1078
    %1080 = vmatprep.subr.mxu0 0.0
    %v1081 = vand.u32 %v91, 4294901760
    %v1082 = vsub.f32 %v91, %v1081
    %1083 = vmatpush1.msra.mxu0 %v1082
    %1084 = vmatprep.subr.mxu0 0.0
    %v1085 = vand.u32 %v90, 4294901760
    %v1086 = vsub.f32 %v90, %v1085
    %1087 = vmatpush1.msra.mxu0 %v1086
    %1088 = vmatprep.subr.mxu0 0.0
    %v1089 = vand.u32 %v89, 4294901760
    %v1090 = vsub.f32 %v89, %v1089
    %1091 = vmatpush1.msra.mxu0 %v1090
    %1092 = vmatprep.subr.mxu0 0.0
    %v1093 = vand.u32 %v88, 4294901760
    %v1094 = vsub.f32 %v88, %v1093
    %1095 = vmatpush1.msra.mxu0 %v1094
    %1096 = vmatprep.subr.mxu0 0.0
    %v1097 = vand.u32 %v87, 4294901760
    %v1098 = vsub.f32 %v87, %v1097
    %1099 = vmatpush1.msra.mxu0 %v1098
    %1100 = vmatprep.subr.mxu0 0.0
    %v1101 = vand.u32 %v86, 4294901760
    %v1102 = vsub.f32 %v86, %v1101
    %1103 = vmatpush1.msra.mxu0 %v1102
    %1104 = vmatprep.subr.mxu0 0.0
    %v1105 = vand.u32 %v85, 4294901760
    %v1106 = vsub.f32 %v85, %v1105
    %1107 = vmatpush1.msra.mxu0 %v1106
    %1108 = vmatprep.subr.mxu0 0.0
    %v1109 = vand.u32 %v84, 4294901760
    %v1110 = vsub.f32 %v84, %v1109
    %1111 = vmatpush1.msra.mxu0 %v1110
    %1112 = vmatprep.subr.mxu0 0.0
    %v1113 = vand.u32 %v83, 4294901760
    %v1114 = vsub.f32 %v83, %v1113
    %1115 = vmatpush1.msra.mxu0 %v1114
    %1116 = vmatprep.subr.mxu0 0.0
    %v1117 = vand.u32 %v82, 4294901760
    %v1118 = vsub.f32 %v82, %v1117
    %1119 = vmatpush1.msra.mxu0 %v1118
    %1120 = vmatprep.subr.mxu0 0.0
    %v1121 = vand.u32 %v81, 4294901760
    %v1122 = vsub.f32 %v81, %v1121
    %1123 = vmatpush1.msra.mxu0 %v1122
    %1124 = vmatprep.subr.mxu0 0.0
    %v1125 = vand.u32 %v80, 4294901760
    %v1126 = vsub.f32 %v80, %v1125
    %1127 = vmatpush1.msra.mxu0 %v1126
    %1128 = vmatprep.subr.mxu0 0.0
    %1129 = vmatpush2.msra.mxu0 0.0
    %1130 = vmatprep.subr.mxu0 0.0
    %1131 = vmatpush2.msra.mxu0 0.0
    %1132 = vmatprep.subr.mxu0 0.0
    %1133 = vmatpush2.msra.mxu0 0.0
    %1134 = vmatprep.subr.mxu0 0.0
    %1135 = vmatpush2.msra.mxu0 0.0
    %1136 = vmatprep.subr.mxu0 0.0
    %1137 = vmatpush2.msra.mxu0 0.0
    %1138 = vmatprep.subr.mxu0 0.0
    %1139 = vmatpush2.msra.mxu0 0.0
    %1140 = vmatprep.subr.mxu0 0.0
    %1141 = vmatpush2.msra.mxu0 0.0
    %1142 = vmatprep.subr.mxu0 0.0
    %1143 = vmatpush2.msra.mxu0 0.0
    %1144 = vmatprep.subr.mxu0 0.0
    %1145 = vmatpush2.msra.mxu0 0.0
    %1146 = vmatprep.subr.mxu0 0.0
    %1147 = vmatpush2.msra.mxu0 0.0
    %1148 = vmatprep.subr.mxu0 0.0
    %1149 = vmatpush2.msra.mxu0 0.0
    %1150 = vmatprep.subr.mxu0 0.0
    %1151 = vmatpush2.msra.mxu0 0.0
    %1152 = vmatprep.subr.mxu0 0.0
    %1153 = vmatpush2.msra.mxu0 0.0
    %1154 = vmatprep.subr.mxu0 0.0
    %1155 = vmatpush2.msra.mxu0 0.0
    %1156 = vmatprep.subr.mxu0 0.0
    %1157 = vmatpush2.msra.mxu0 0.0
    %1158 = vmatprep.subr.mxu0 0.0
    %1159 = vmatpush2.msra.mxu0 0.0
    %1160 = vmatprep.mubr.f32.mxu0 0.0
    %v1161 = vand.u32 %v62, 4294901760
    %v1162 = vsub.f32 %v62, %v1161
    %1163 = vmatmul.mubr.f32.gmra.mxu0 %v1162
    %v1164 = vpop.f32.mrf.mxu0
    %v1165 = vadd.f32 %v1055, %v1164
    %v1166 = vpop.f32.mrf.mxu0
    %1167 = vmatprep.mubr.f32.mxu0 0.0
    %v1168 = vand.u32 %v63, 4294901760
    %v1169 = vsub.f32 %v63, %v1168
    %1170 = vmatmul.mubr.f32.gmra.mxu0 %v1169
    %v1171 = vpop.f32.mrf.mxu0
    %v1172 = vadd.f32 %v1061, %v1171
    %v1173 = vpop.f32.mrf.mxu0
    %1174 = vdwg.mxu0
    %1175 = vmatprep.subr.mxu0 0.0
    %v1176 = vand.u32 %v95, 4294901760
    %1177 = vmatpush1.msra.mxu0 %v1176
    %1178 = vmatprep.subr.mxu0 0.0
    %v1179 = vand.u32 %v94, 4294901760
    %1180 = vmatpush1.msra.mxu0 %v1179
    %1181 = vmatprep.subr.mxu0 0.0
    %v1182 = vand.u32 %v93, 4294901760
    %1183 = vmatpush1.msra.mxu0 %v1182
    %1184 = vmatprep.subr.mxu0 0.0
    %v1185 = vand.u32 %v92, 4294901760
    %1186 = vmatpush1.msra.mxu0 %v1185
    %1187 = vmatprep.subr.mxu0 0.0
    %v1188 = vand.u32 %v91, 4294901760
    %1189 = vmatpush1.msra.mxu0 %v1188
    %1190 = vmatprep.subr.mxu0 0.0
    %v1191 = vand.u32 %v90, 4294901760
    %1192 = vmatpush1.msra.mxu0 %v1191
    %1193 = vmatprep.subr.mxu0 0.0
    %v1194 = vand.u32 %v89, 4294901760
    %1195 = vmatpush1.msra.mxu0 %v1194
    %1196 = vmatprep.subr.mxu0 0.0
    %v1197 = vand.u32 %v88, 4294901760
    %1198 = vmatpush1.msra.mxu0 %v1197
    %1199 = vmatprep.subr.mxu0 0.0
    %v1200 = vand.u32 %v87, 4294901760
    %1201 = vmatpush1.msra.mxu0 %v1200
    %1202 = vmatprep.subr.mxu0 0.0
    %v1203 = vand.u32 %v86, 4294901760
    %1204 = vmatpush1.msra.mxu0 %v1203
    %1205 = vmatprep.subr.mxu0 0.0
    %v1206 = vand.u32 %v85, 4294901760
    %1207 = vmatpush1.msra.mxu0 %v1206
    %1208 = vmatprep.subr.mxu0 0.0
    %v1209 = vand.u32 %v84, 4294901760
    %1210 = vmatpush1.msra.mxu0 %v1209
    %1211 = vmatprep.subr.mxu0 0.0
    %v1212 = vand.u32 %v83, 4294901760
    %1213 = vmatpush1.msra.mxu0 %v1212
    %1214 = vmatprep.subr.mxu0 0.0
    %v1215 = vand.u32 %v82, 4294901760
    %1216 = vmatpush1.msra.mxu0 %v1215
    %1217 = vmatprep.subr.mxu0 0.0
    %v1218 = vand.u32 %v81, 4294901760
    %1219 = vmatpush1.msra.mxu0 %v1218
    %1220 = vmatprep.subr.mxu0 0.0
    %v1221 = vand.u32 %v80, 4294901760
    %1222 = vmatpush1.msra.mxu0 %v1221
    %1223 = vmatprep.subr.mxu0 0.0
    %1224 = vmatpush2.msra.mxu0 0.0
    %1225 = vmatprep.subr.mxu0 0.0
    %1226 = vmatpush2.msra.mxu0 0.0
    %1227 = vmatprep.subr.mxu0 0.0
    %1228 = vmatpush2.msra.mxu0 0.0
    %1229 = vmatprep.subr.mxu0 0.0
    %1230 = vmatpush2.msra.mxu0 0.0
    %1231 = vmatprep.subr.mxu0 0.0
    %1232 = vmatpush2.msra.mxu0 0.0
    %1233 = vmatprep.subr.mxu0 0.0
    %1234 = vmatpush2.msra.mxu0 0.0
    %1235 = vmatprep.subr.mxu0 0.0
    %1236 = vmatpush2.msra.mxu0 0.0
    %1237 = vmatprep.subr.mxu0 0.0
    %1238 = vmatpush2.msra.mxu0 0.0
    %1239 = vmatprep.subr.mxu0 0.0
    %1240 = vmatpush2.msra.mxu0 0.0
    %1241 = vmatprep.subr.mxu0 0.0
    %1242 = vmatpush2.msra.mxu0 0.0
    %1243 = vmatprep.subr.mxu0 0.0
    %1244 = vmatpush2.msra.mxu0 0.0
    %1245 = vmatprep.subr.mxu0 0.0
    %1246 = vmatpush2.msra.mxu0 0.0
    %1247 = vmatprep.subr.mxu0 0.0
    %1248 = vmatpush2.msra.mxu0 0.0
    %1249 = vmatprep.subr.mxu0 0.0
    %1250 = vmatpush2.msra.mxu0 0.0
    %1251 = vmatprep.subr.mxu0 0.0
    %1252 = vmatpush2.msra.mxu0 0.0
    %1253 = vmatprep.subr.mxu0 0.0
    %1254 = vmatpush2.msra.mxu0 0.0
    %1255 = vmatprep.mubr.f32.mxu0 0.0
    %v1256 = vand.u32 %v62, 4294901760
    %v1257 = vsub.f32 %v62, %v1256
    %v1258 = vand.u32 %v1257, 4294901760
    %1259 = vmatmul.mubr.f32.gmra.mxu0 %v1258
    %v1260 = vpop.f32.mrf.mxu0
    %v1261 = vadd.f32 %v1165, %v1260
    %v1262 = vpop.f32.mrf.mxu0
    %1263 = vmatprep.mubr.f32.mxu0 0.0
    %v1264 = vand.u32 %v63, 4294901760
    %v1265 = vsub.f32 %v63, %v1264
    %v1266 = vand.u32 %v1265, 4294901760
    %1267 = vmatmul.mubr.f32.gmra.mxu0 %v1266
    %v1268 = vpop.f32.mrf.mxu0
    %v1269 = vadd.f32 %v1172, %v1268
    %v1270 = vpop.f32.mrf.mxu0
    %1271 = vdwg.mxu0
    %1272 = vmatprep.subr.mxu0 0.0
    %v1273 = vand.u32 %v95, 4294901760
    %v1274 = vsub.f32 %v95, %v1273
    %v1275 = vand.u32 %v1274, 4294901760
    %1276 = vmatpush1.msra.mxu0 %v1275
    %1277 = vmatprep.subr.mxu0 0.0
    %v1278 = vand.u32 %v94, 4294901760
    %v1279 = vsub.f32 %v94, %v1278
    %v1280 = vand.u32 %v1279, 4294901760
    %1281 = vmatpush1.msra.mxu0 %v1280
    %1282 = vmatprep.subr.mxu0 0.0
    %v1283 = vand.u32 %v93, 4294901760
    %v1284 = vsub.f32 %v93, %v1283
    %v1285 = vand.u32 %v1284, 4294901760
    %1286 = vmatpush1.msra.mxu0 %v1285
    %1287 = vmatprep.subr.mxu0 0.0
    %v1288 = vand.u32 %v92, 4294901760
    %v1289 = vsub.f32 %v92, %v1288
    %v1290 = vand.u32 %v1289, 4294901760
    %1291 = vmatpush1.msra.mxu0 %v1290
    %1292 = vmatprep.subr.mxu0 0.0
    %v1293 = vand.u32 %v91, 4294901760
    %v1294 = vsub.f32 %v91, %v1293
    %v1295 = vand.u32 %v1294, 4294901760
    %1296 = vmatpush1.msra.mxu0 %v1295
    %1297 = vmatprep.subr.mxu0 0.0
    %v1298 = vand.u32 %v90, 4294901760
    %v1299 = vsub.f32 %v90, %v1298
    %v1300 = vand.u32 %v1299, 4294901760
    %1301 = vmatpush1.msra.mxu0 %v1300
    %1302 = vmatprep.subr.mxu0 0.0
    %v1303 = vand.u32 %v89, 4294901760
    %v1304 = vsub.f32 %v89, %v1303
    %v1305 = vand.u32 %v1304, 4294901760
    %1306 = vmatpush1.msra.mxu0 %v1305
    %1307 = vmatprep.subr.mxu0 0.0
    %v1308 = vand.u32 %v88, 4294901760
    %v1309 = vsub.f32 %v88, %v1308
    %v1310 = vand.u32 %v1309, 4294901760
    %1311 = vmatpush1.msra.mxu0 %v1310
    %1312 = vmatprep.subr.mxu0 0.0
    %v1313 = vand.u32 %v87, 4294901760
    %v1314 = vsub.f32 %v87, %v1313
    %v1315 = vand.u32 %v1314, 4294901760
    %1316 = vmatpush1.msra.mxu0 %v1315
    %1317 = vmatprep.subr.mxu0 0.0
    %v1318 = vand.u32 %v86, 4294901760
    %v1319 = vsub.f32 %v86, %v1318
    %v1320 = vand.u32 %v1319, 4294901760
    %1321 = vmatpush1.msra.mxu0 %v1320
    %1322 = vmatprep.subr.mxu0 0.0
    %v1323 = vand.u32 %v85, 4294901760
    %v1324 = vsub.f32 %v85, %v1323
    %v1325 = vand.u32 %v1324, 4294901760
    %1326 = vmatpush1.msra.mxu0 %v1325
    %1327 = vmatprep.subr.mxu0 0.0
    %v1328 = vand.u32 %v84, 4294901760
    %v1329 = vsub.f32 %v84, %v1328
    %v1330 = vand.u32 %v1329, 4294901760
    %1331 = vmatpush1.msra.mxu0 %v1330
    %1332 = vmatprep.subr.mxu0 0.0
    %v1333 = vand.u32 %v83, 4294901760
    %v1334 = vsub.f32 %v83, %v1333
    %v1335 = vand.u32 %v1334, 4294901760
    %1336 = vmatpush1.msra.mxu0 %v1335
    %1337 = vmatprep.subr.mxu0 0.0
    %v1338 = vand.u32 %v82, 4294901760
    %v1339 = vsub.f32 %v82, %v1338
    %v1340 = vand.u32 %v1339, 4294901760
    %1341 = vmatpush1.msra.mxu0 %v1340
    %1342 = vmatprep.subr.mxu0 0.0
    %v1343 = vand.u32 %v81, 4294901760
    %v1344 = vsub.f32 %v81, %v1343
    %v1345 = vand.u32 %v1344, 4294901760
    %1346 = vmatpush1.msra.mxu0 %v1345
    %1347 = vmatprep.subr.mxu0 0.0
    %v1348 = vand.u32 %v80, 4294901760
    %v1349 = vsub.f32 %v80, %v1348
    %v1350 = vand.u32 %v1349, 4294901760
    %1351 = vmatpush1.msra.mxu0 %v1350
    %1352 = vmatprep.subr.mxu0 0.0
    %1353 = vmatpush2.msra.mxu0 0.0
    %1354 = vmatprep.subr.mxu0 0.0
    %1355 = vmatpush2.msra.mxu0 0.0
    %1356 = vmatprep.subr.mxu0 0.0
    %1357 = vmatpush2.msra.mxu0 0.0
    %1358 = vmatprep.subr.mxu0 0.0
    %1359 = vmatpush2.msra.mxu0 0.0
    %1360 = vmatprep.subr.mxu0 0.0
    %1361 = vmatpush2.msra.mxu0 0.0
    %1362 = vmatprep.subr.mxu0 0.0
    %1363 = vmatpush2.msra.mxu0 0.0
    %1364 = vmatprep.subr.mxu0 0.0
    %1365 = vmatpush2.msra.mxu0 0.0
    %1366 = vmatprep.subr.mxu0 0.0
    %1367 = vmatpush2.msra.mxu0 0.0
    %1368 = vmatprep.subr.mxu0 0.0
    %1369 = vmatpush2.msra.mxu0 0.0
    %1370 = vmatprep.subr.mxu0 0.0
    %1371 = vmatpush2.msra.mxu0 0.0
    %1372 = vmatprep.subr.mxu0 0.0
    %1373 = vmatpush2.msra.mxu0 0.0
    %1374 = vmatprep.subr.mxu0 0.0
    %1375 = vmatpush2.msra.mxu0 0.0
    %1376 = vmatprep.subr.mxu0 0.0
    %1377 = vmatpush2.msra.mxu0 0.0
    %1378 = vmatprep.subr.mxu0 0.0
    %1379 = vmatpush2.msra.mxu0 0.0
    %1380 = vmatprep.subr.mxu0 0.0
    %1381 = vmatpush2.msra.mxu0 0.0
    %1382 = vmatprep.subr.mxu0 0.0
    %1383 = vmatpush2.msra.mxu0 0.0
    %1384 = vmatprep.mubr.f32.mxu0 0.0
    %v1385 = vand.u32 %v62, 4294901760
    %1386 = vmatmul.mubr.f32.gmra.mxu0 %v1385
    %v1387 = vpop.f32.mrf.mxu0
    %v1388 = vadd.f32 %v1261, %v1387
    %v1389 = vpop.f32.mrf.mxu0
    %1390 = vmatprep.mubr.f32.mxu0 0.0
    %v1391 = vand.u32 %v63, 4294901760
    %1392 = vmatmul.mubr.f32.gmra.mxu0 %v1391
    %v1393 = vpop.f32.mrf.mxu0
    %v1394 = vadd.f32 %v1269, %v1393
    %v1395 = vpop.f32.mrf.mxu0
    %1396 = vdwg.mxu0
    %1397 = vmatprep.subr.mxu0 0.0
    %v1398 = vand.u32 %v95, 4294901760
    %1399 = vmatpush1.msra.mxu0 %v1398
    %1400 = vmatprep.subr.mxu0 0.0
    %v1401 = vand.u32 %v94, 4294901760
    %1402 = vmatpush1.msra.mxu0 %v1401
    %1403 = vmatprep.subr.mxu0 0.0
    %v1404 = vand.u32 %v93, 4294901760
    %1405 = vmatpush1.msra.mxu0 %v1404
    %1406 = vmatprep.subr.mxu0 0.0
    %v1407 = vand.u32 %v92, 4294901760
    %1408 = vmatpush1.msra.mxu0 %v1407
    %1409 = vmatprep.subr.mxu0 0.0
    %v1410 = vand.u32 %v91, 4294901760
    %1411 = vmatpush1.msra.mxu0 %v1410
    %1412 = vmatprep.subr.mxu0 0.0
    %v1413 = vand.u32 %v90, 4294901760
    %1414 = vmatpush1.msra.mxu0 %v1413
    %1415 = vmatprep.subr.mxu0 0.0
    %v1416 = vand.u32 %v89, 4294901760
    %1417 = vmatpush1.msra.mxu0 %v1416
    %1418 = vmatprep.subr.mxu0 0.0
    %v1419 = vand.u32 %v88, 4294901760
    %1420 = vmatpush1.msra.mxu0 %v1419
    %1421 = vmatprep.subr.mxu0 0.0
    %v1422 = vand.u32 %v87, 4294901760
    %1423 = vmatpush1.msra.mxu0 %v1422
    %1424 = vmatprep.subr.mxu0 0.0
    %v1425 = vand.u32 %v86, 4294901760
    %1426 = vmatpush1.msra.mxu0 %v1425
    %1427 = vmatprep.subr.mxu0 0.0
    %v1428 = vand.u32 %v85, 4294901760
    %1429 = vmatpush1.msra.mxu0 %v1428
    %1430 = vmatprep.subr.mxu0 0.0
    %v1431 = vand.u32 %v84, 4294901760
    %1432 = vmatpush1.msra.mxu0 %v1431
    %1433 = vmatprep.subr.mxu0 0.0
    %v1434 = vand.u32 %v83, 4294901760
    %1435 = vmatpush1.msra.mxu0 %v1434
    %1436 = vmatprep.subr.mxu0 0.0
    %v1437 = vand.u32 %v82, 4294901760
    %1438 = vmatpush1.msra.mxu0 %v1437
    %1439 = vmatprep.subr.mxu0 0.0
    %v1440 = vand.u32 %v81, 4294901760
    %1441 = vmatpush1.msra.mxu0 %v1440
    %1442 = vmatprep.subr.mxu0 0.0
    %v1443 = vand.u32 %v80, 4294901760
    %1444 = vmatpush1.msra.mxu0 %v1443
    %1445 = vmatprep.subr.mxu0 0.0
    %1446 = vmatpush2.msra.mxu0 0.0
    %1447 = vmatprep.subr.mxu0 0.0
    %1448 = vmatpush2.msra.mxu0 0.0
    %1449 = vmatprep.subr.mxu0 0.0
    %1450 = vmatpush2.msra.mxu0 0.0
    %1451 = vmatprep.subr.mxu0 0.0
    %1452 = vmatpush2.msra.mxu0 0.0
    %1453 = vmatprep.subr.mxu0 0.0
    %1454 = vmatpush2.msra.mxu0 0.0
    %1455 = vmatprep.subr.mxu0 0.0
    %1456 = vmatpush2.msra.mxu0 0.0
    %1457 = vmatprep.subr.mxu0 0.0
    %1458 = vmatpush2.msra.mxu0 0.0
    %1459 = vmatprep.subr.mxu0 0.0
    %1460 = vmatpush2.msra.mxu0 0.0
    %1461 = vmatprep.subr.mxu0 0.0
    %1462 = vmatpush2.msra.mxu0 0.0
    %1463 = vmatprep.subr.mxu0 0.0
    %1464 = vmatpush2.msra.mxu0 0.0
    %1465 = vmatprep.subr.mxu0 0.0
    %1466 = vmatpush2.msra.mxu0 0.0
    %1467 = vmatprep.subr.mxu0 0.0
    %1468 = vmatpush2.msra.mxu0 0.0
    %1469 = vmatprep.subr.mxu0 0.0
    %1470 = vmatpush2.msra.mxu0 0.0
    %1471 = vmatprep.subr.mxu0 0.0
    %1472 = vmatpush2.msra.mxu0 0.0
    %1473 = vmatprep.subr.mxu0 0.0
    %1474 = vmatpush2.msra.mxu0 0.0
    %1475 = vmatprep.subr.mxu0 0.0
    %1476 = vmatpush2.msra.mxu0 0.0
    %1477 = vmatprep.mubr.f32.mxu0 0.0
    %v1478 = vand.u32 %v62, 4294901760
    %1479 = vmatmul.mubr.f32.gmra.mxu0 %v1478
    %v1480 = vpop.f32.mrf.mxu0
    %v1481 = vadd.f32 %v1388, %v1480
    %v1482 = vpop.f32.mrf.mxu0
    %1483 = vmatprep.mubr.f32.mxu0 0.0
    %v1484 = vand.u32 %v63, 4294901760
    %1485 = vmatmul.mubr.f32.gmra.mxu0 %v1484
    %v1486 = vpop.f32.mrf.mxu0
    %v1487 = vadd.f32 %v1394, %v1486
    %v1488 = vpop.f32.mrf.mxu0
    %1489 = vdwg.mxu0
    %s1490 = smul.u32 0, 128
    %s1491 = sshra.s32 %s1490, 7
    %s1492 = sand.u32 %s1490, 127
    %s1493 = scalar_lea.vmem [#allocation2], %s1491
    %v1494 = vld [vmem:[%s1493] sm:$0xff]
    %v1495 = vld [vmem:[%s1493 + $0x8] sm:$0xff]
    %v1496 = vsub.f32 %v1481, %v1494
    %v1497 = vsub.f32 %v1487, %v1495
    %v1498 = vmul.f32 %v796, %v1496
    %v1499 = vmul.f32 %v798, %v1497
    %v1500 = vadd.f32 %v1494, %v1498
    %v1501 = vadd.f32 %v1495, %v1499
    %1502 = vst [vmem:[#allocation8] sm:$0xff] %v1500
    %1503 = vst [vmem:[#allocation8 + $0x8] sm:$0xff] %v1501
    // Predicated region
    $region34: #{highway_layer.1} parent=1 // pred_check
      _
    $region35: #{highway_layer.1} parent=1 // pred_check_branch
      %1505 = sbr.rel (0) target = $region37
    $region36: #{highway_layer.1} parent=1 // pred_region
      %s1507 = ssub.s32 256, 256
      %1508 = vsyncadd [#allocation4], %s1507
      %s1509 = sshll.u32 [#allocation8], 4
      %s1510 = int_to_ptr.vmem [resolvable:$true] %s1509
      %1515 = dma.vmem_to_hbm [thread:$0]  %s1510, 256, %s5, [#allocation4], 128, 128, 8
    $region37: #{highway_layer.1} parent=1 // pred_fallthru
      _
    // Predicated region
    $region38: #{highway_layer.1} parent=1 // pred_check
      _
    $region39: #{highway_layer.1} parent=1 // pred_check_branch
      %1517 = sbr.rel (0) target = $region41
    $region40: #{highway_layer.1} parent=1 // pred_region
      %1518 = dma.done [#allocation4], 256
    $region41: #{highway_layer.1} parent=1 // pred_fallthru
      _
    %1519 = vsyncpa [#allocation3], 1
    %1520 = vsyncpa [#allocation6], 1
    %1521 = vsyncpa [#allocation4], 1

</llo_original>
